<compile_context>
chip_gen: v6e
topology: v6e:2x2x1
jax: 0.10.0
libtpu: 0.0.40
codegen_flags: <defaults>
</compile_context>

<pallas_src>
import math

import jax
import jax.numpy as jnp
from jax.experimental import pallas as pl
from jax.experimental.pallas import tpu as pltpu

# -------------------- model hyperparameters (small) --------------------
N = 2          # batch
L = 8          # sequence length
E = 32         # embeddingSize
H = 4          # heads
D = E // H     # head_dimensions
LIN = 4        # linearDimension -> FFN hidden = LIN * E = 128 (lane dense)
FF = LIN * E   # 128
NL = N * L     # folded batch*sequence axis
EPS = 1e-5     # nn.LayerNorm default eps
NEG = -1e20    # masked_fill value from the reference


# ------------------------------ kernel ---------------------------------
def _decoder_block_kernel(x_ref, mask_ref, wmat_ref, w2_ref, bias_ref, o_ref):
    xs = x_ref[...]            # (NL, E)
    wmat = wmat_ref[...]       # (E, 12E)  [Wqkv1 | Wo1 | Wqkv2 | Wo2 | W1]
    w2 = w2_ref[...]           # (FF, E)
    b = bias_ref[...]          # (12, 128) packed biases / LN params

    # Static lane slices of the packed weight slab (done once, loop-free).
    wqkv1 = wmat[:, 0:3 * E]          # (E, 3E)   Q-columns pre-scaled by 1/sqrt(E)
    wo1   = wmat[:, 3 * E:4 * E]      # (E, E)
    wqkv2 = wmat[:, 4 * E:7 * E]      # (E, 3E)
    wo2   = wmat[:, 7 * E:8 * E]      # (E, E)
    w1    = wmat[:, 8 * E:12 * E]     # (E, FF)

    # Packed biases: keep everything 2-D so adds broadcast over sublanes.
    bqkv1 = b[0:1, 0:3 * E]
    bqkv2 = b[1:2, 0:3 * E]
    bo1   = b[2:3, 0:E]
    bo2   = b[3:4, 0:E]
    bf1   = b[4:5, 0:FF]
    bf2   = b[5:6, 0:E]
    ln_g  = b[6:9, 0:E]               # rows: norm, norm1, norm2
    ln_b  = b[9:12, 0:E]

    # Block-diagonal additive mask bias over the folded (N*L) axis, built once.
    # Off-diagonal (cross-batch) blocks get -1e20 -> exactly-zero softmax weight,
    # so folding the batch into one softmax axis is exact.
    mask = mask_ref[...]                                            # (L, L)
    bias_ll = jnp.where(mask == 0, jnp.float32(NEG), jnp.float32(0.0))
    neg_blk = jnp.full((L, L), jnp.float32(NEG), dtype=jnp.float32)
    block_rows = []
    for n in range(N):
        block_rows.append(jnp.concatenate(
            [bias_ll if m == n else neg_blk for m in range(N)], axis=1))
    bias_nl = jnp.concatenate(block_rows, axis=0)                   # (NL, NL)

    def layer_norm(v, g, bb):
        mu = jnp.mean(v, axis=-1, keepdims=True)
        var = jnp.mean((v - mu) ** 2, axis=-1, keepdims=True)
        return (v - mu) * jax.lax.rsqrt(var + EPS) * g + bb

    def self_attention(xin, wqkv, bqkv, wo, bo):
        # xin: (NL, E).  wqkv already carries the 1/sqrt(E) score scale in its
        # Q columns (folded at pack time); masked_fill-before-scale vs
        # scale-then-bias are equivalent post-softmax (both saturate to 0).
        qkv = jnp.dot(xin, wqkv, preferred_element_type=jnp.float32) + bqkv  # (NL, 3E)
        q = qkv[:, 0:E]
        k = qkv[:, E:2 * E]
        v = qkv[:, 2 * E:3 * E]
        kT = k.T                                   # single (NL,E)->(E,NL) transpose

        ctx_parts = []
        for h in range(H):                         # H=4, fully unrolled
            qh = q[:, h * D:(h + 1) * D]           # (NL, D)  in-tile lane slice
            khT = kT[h * D:(h + 1) * D, :]         # (D, NL)  sublane-aligned slice
            vh = v[:, h * D:(h + 1) * D]           # (NL, D)
            s = jnp.dot(qh, khT, preferred_element_type=jnp.float32) + bias_nl
            s = s - jnp.max(s, axis=-1, keepdims=True)
            p = jnp.exp(s)
            p = p * pl.reciprocal(jnp.sum(p, axis=-1, keepdims=True))  # exact
            ctx_parts.append(jnp.dot(p, vh, preferred_element_type=jnp.float32))
        # Re-assemble contexts in (NL, H*D) = (NL, E) lane layout so the output
        # projection is ONE matmul against the original Wo (no per-head proj+sum).
        ctx = jnp.concatenate(ctx_parts, axis=1)                      # (NL, E)
        return jnp.dot(ctx, wo, preferred_element_type=jnp.float32) + bo

    # ---- DecoderBlock.forward (dropout = identity in eval) ----
    a1 = self_attention(xs, wqkv1, bqkv1, wo1, bo1)
    h0 = layer_norm(a1 + xs, ln_g[0:1, :], ln_b[0:1, :])          # self.norm

    # ---- TransformerBlock.forward (values=keys=queries=h0) ----
    a2 = self_attention(h0, wqkv2, bqkv2, wo2, bo2)
    h1 = layer_norm(a2 + h0, ln_g[1:2, :], ln_b[1:2, :])          # norm1
    ff = jnp.maximum(jnp.dot(h1, w1, preferred_element_type=jnp.float32) + bf1, 0.0)
    ff = jnp.dot(ff, w2, preferred_element_type=jnp.float32) + bf2
    out = layer_norm(ff + h1, ln_g[2:3, :], ln_b[2:3, :])         # norm2

    o_ref[...] = out.astype(o_ref.dtype)                          # single slab store


# --------------------- one-time parameter packing -----------------------
def pack_params(params):
    """Pack the 16 parameter arrays into 3 lane-dense slabs (run ONCE, outside
    the per-call path).  1/sqrt(E) is folded into the Q weight/bias here."""
    (aw1, ab1, aw2, ab2, ln_g, ln_b, w1, bf1, w2, bf2) = params
    s = 1.0 / math.sqrt(E)

    def pack_qkv(aw, ab):
        wqkv = jnp.concatenate([aw[0] * s, aw[1], aw[2]], axis=1)   # (E, 3E)
        bqkv = jnp.concatenate([ab[0] * s, ab[1], ab[2]])           # (3E,)
        return wqkv, bqkv

    wqkv1, bqkv1 = pack_qkv(aw1, ab1)
    wqkv2, bqkv2 = pack_qkv(aw2, ab2)

    # (E, 12E) = [Wqkv1 | Wo1 | Wqkv2 | Wo2 | W1]  (Wqkv2 / W1 start lane-aligned)
    wmat = jnp.concatenate([wqkv1, aw1[3], wqkv2, aw2[3], w1], axis=1)

    def row(v):
        v = jnp.ravel(v)
        return jnp.pad(v, (0, 128 - v.shape[0]))

    bias_slab = jnp.stack([
        row(bqkv1), row(bqkv2),
        row(ab1[3]), row(ab2[3]),
        row(bf1[0]), row(bf2[0]),
        row(ln_g[0]), row(ln_g[1]), row(ln_g[2]),
        row(ln_b[0]), row(ln_b[1]), row(ln_b[2]),
    ], axis=0)                                                      # (12, 128)

    return wmat, w2, bias_slab


# ------------------------------ wrapper ---------------------------------
@jax.jit
def decoder_block(x, mask, wmat, w2mat, bias_slab):
    xs = x.reshape(NL, E)                      # contiguous-dims reshape (free)
    vmem = pl.BlockSpec(memory_space=pltpu.MemorySpace.VMEM)
    out = pl.pallas_call(
        _decoder_block_kernel,
        out_shape=jax.ShapeDtypeStruct((NL, E), jnp.float32),
        in_specs=[vmem, vmem, vmem, vmem, vmem],   # whole arrays resident in VMEM,
        out_specs=vmem,                            # no grid, no pipeline overhead
    )(xs, mask, wmat, w2mat, bias_slab)
    return out.reshape(N, L, E)


# ------------------------- pure-JAX reference ----------------------------
def _reference(x, mask, params):
    (aw1, ab1, aw2, ab2, ln_g, ln_b, w1, bf1, w2, bf2) = params

    def ln(v, g, b):
        mu = v.mean(-1, keepdims=True)
        var = ((v - mu) ** 2).mean(-1, keepdims=True)
        return (v - mu) / jnp.sqrt(var + EPS) * g + b

    def attn(xin, aw, ab):
        q = xin @ aw[0] + ab[0]
        k = xin @ aw[1] + ab[1]
        v = xin @ aw[2] + ab[2]
        q = q.reshape(N, L, H, D)
        k = k.reshape(N, L, H, D)
        v = v.reshape(N, L, H, D)
        s = jnp.einsum('nqhd,nkhd->nhqk', q, k)
        s = jnp.where(mask[None, None] == 0, NEG, s)
        p = jax.nn.softmax(s / math.sqrt(E), axis=3)
        o = jnp.einsum('nhql,nlhd->nqhd', p, v).reshape(N, L, E)
        return o @ aw[3] + ab[3]

    a1 = attn(x, aw1, ab1)
    h0 = ln(a1 + x, ln_g[0], ln_b[0])
    a2 = attn(h0, aw2, ab2)
    h1 = ln(a2 + h0, ln_g[1], ln_b[1])
    ff = jax.nn.relu(h1 @ w1 + bf1[0]) @ w2 + bf2[0]
    return ln(ff + h1, ln_g[2], ln_b[2])


# ------------------------------ main -------------------------------------
if __name__ == "__main__":
    key = jax.random.PRNGKey(0)
    keys = jax.random.split(key, 12)

    x = jax.random.normal(keys[0], (N, L, E), jnp.float32)
    mask = jnp.tril(jnp.ones((L, L), jnp.float32))          # causal target mask

    s = 0.1
    aw1 = jax.random.normal(keys[1], (4, E, E), jnp.float32) * s
    ab1 = jax.random.normal(keys[2], (4, E), jnp.float32) * s
    aw2 = jax.random.normal(keys[3], (4, E, E), jnp.float32) * s
    ab2 = jax.random.normal(keys[4], (4, E), jnp.float32) * s
    ln_g = 1.0 + jax.random.normal(keys[5], (3, E), jnp.float32) * s
    ln_b = jax.random.normal(keys[6], (3, E), jnp.float32) * s
    w1 = jax.random.normal(keys[7], (E, FF), jnp.float32) * s
    bf1 = jax.random.normal(keys[8], (1, FF), jnp.float32) * s
    w2 = jax.random.normal(keys[9], (FF, E), jnp.float32) * s
    bf2 = jax.random.normal(keys[10], (1, E), jnp.float32) * s

    params = (aw1, ab1, aw2, ab2, ln_g, ln_b, w1, bf1, w2, bf2)

    # One-time packing (outside the per-call path).
    wmat, w2mat, bias_slab = pack_params(params)
    wmat, w2mat, bias_slab = jax.block_until_ready((wmat, w2mat, bias_slab))

    out = decoder_block(x, mask, wmat, w2mat, bias_slab)
    out = jax.block_until_ready(out)

    ref = _reference(x, mask, params)
    assert out.shape == (N, L, E)
    assert jnp.allclose(out, ref, atol=1e-4, rtol=1e-4), "mismatch vs reference"

    print("KERNEL_OK")
</pallas_src>

<mosaic_0001>
module attributes {stable_mosaic.version = 11 : i64} {
  func.func @_decoder_block_kernel(%arg0: memref<16x32xf32, #tpu.memory_space<vmem>>, %arg1: memref<8x8xf32, #tpu.memory_space<vmem>>, %arg2: memref<32x384xf32, #tpu.memory_space<vmem>>, %arg3: memref<128x32xf32, #tpu.memory_space<vmem>>, %arg4: memref<12x128xf32, #tpu.memory_space<vmem>>, %arg5: memref<16x32xf32, #tpu.memory_space<vmem>>) attributes {dimension_semantics = [], scalar_prefetch = 0 : i64, scratch_operands = 0 : i64, tpu.core_type = #tpu.core_type<tc>} {
    %c0 = arith.constant 0 : index
    %c0_0 = arith.constant 0 : index
    %0 = vector.load %arg0[%c0, %c0_0] : memref<16x32xf32, #tpu.memory_space<vmem>>, vector<16x32xf32>
    %c0_1 = arith.constant 0 : index
    %c0_2 = arith.constant 0 : index
    %1 = vector.load %arg2[%c0_1, %c0_2] : memref<32x384xf32, #tpu.memory_space<vmem>>, vector<32x384xf32>
    %c0_3 = arith.constant 0 : index
    %c0_4 = arith.constant 0 : index
    %2 = vector.load %arg3[%c0_3, %c0_4] : memref<128x32xf32, #tpu.memory_space<vmem>>, vector<128x32xf32>
    %c0_5 = arith.constant 0 : index
    %c0_6 = arith.constant 0 : index
    %3 = vector.load %arg4[%c0_5, %c0_6] : memref<12x128xf32, #tpu.memory_space<vmem>>, vector<12x128xf32>
    %4 = vector.extract_strided_slice %1 {offsets = [0, 0], sizes = [32, 96], strides = [1, 1]} : vector<32x384xf32> to vector<32x96xf32>
    %5 = vector.extract_strided_slice %1 {offsets = [0, 96], sizes = [32, 32], strides = [1, 1]} : vector<32x384xf32> to vector<32x32xf32>
    %6 = vector.extract_strided_slice %1 {offsets = [0, 128], sizes = [32, 96], strides = [1, 1]} : vector<32x384xf32> to vector<32x96xf32>
    %7 = vector.extract_strided_slice %1 {offsets = [0, 224], sizes = [32, 32], strides = [1, 1]} : vector<32x384xf32> to vector<32x32xf32>
    %8 = vector.extract_strided_slice %1 {offsets = [0, 256], sizes = [32, 128], strides = [1, 1]} : vector<32x384xf32> to vector<32x128xf32>
    %9 = vector.extract_strided_slice %3 {offsets = [0, 0], sizes = [1, 96], strides = [1, 1]} : vector<12x128xf32> to vector<1x96xf32>
    %10 = vector.extract_strided_slice %3 {offsets = [1, 0], sizes = [1, 96], strides = [1, 1]} : vector<12x128xf32> to vector<1x96xf32>
    %11 = vector.extract_strided_slice %3 {offsets = [2, 0], sizes = [1, 32], strides = [1, 1]} : vector<12x128xf32> to vector<1x32xf32>
    %12 = vector.extract_strided_slice %3 {offsets = [3, 0], sizes = [1, 32], strides = [1, 1]} : vector<12x128xf32> to vector<1x32xf32>
    %13 = vector.extract_strided_slice %3 {offsets = [4, 0], sizes = [1, 128], strides = [1, 1]} : vector<12x128xf32> to vector<1x128xf32>
    %14 = vector.extract_strided_slice %3 {offsets = [5, 0], sizes = [1, 32], strides = [1, 1]} : vector<12x128xf32> to vector<1x32xf32>
    %15 = vector.extract_strided_slice %3 {offsets = [6, 0], sizes = [3, 32], strides = [1, 1]} : vector<12x128xf32> to vector<3x32xf32>
    %16 = vector.extract_strided_slice %3 {offsets = [9, 0], sizes = [3, 32], strides = [1, 1]} : vector<12x128xf32> to vector<3x32xf32>
    %c0_7 = arith.constant 0 : index
    %c0_8 = arith.constant 0 : index
    %17 = vector.load %arg1[%c0_7, %c0_8] : memref<8x8xf32, #tpu.memory_space<vmem>>, vector<8x8xf32>
    %cst = arith.constant 0.000000e+00 : f32
    %18 = vector.broadcast %cst : f32 to vector<8x8xf32>
    %19 = arith.cmpf oeq, %17, %18 : vector<8x8xf32>
    %cst_9 = arith.constant -1.000000e+20 : f32
    %cst_10 = arith.constant 0.000000e+00 : f32
    %20 = vector.broadcast %cst_9 : f32 to vector<8x8xf32>
    %21 = vector.broadcast %cst_10 : f32 to vector<8x8xf32>
    %22 = arith.select %19, %20, %21 : vector<8x8xi1>, vector<8x8xf32>
    %cst_11 = arith.constant -1.000000e+20 : f32
    %23 = vector.broadcast %cst_11 : f32 to vector<8x8xf32>
    %24 = tpu.concatenate %22, %23 in 1 : vector<8x8xf32>, vector<8x8xf32> -> vector<8x16xf32>
    %25 = tpu.concatenate %23, %22 in 1 : vector<8x8xf32>, vector<8x8xf32> -> vector<8x16xf32>
    %26 = tpu.concatenate %24, %25 in 0 : vector<8x16xf32>, vector<8x16xf32> -> vector<16x16xf32>
    %cst_12 = arith.constant dense<0.000000e+00> : vector<16x96xf32>
    %27 = tpu.matmul %0, %4, %cst_12 {dimension_numbers = #tpu.dot_dimension_numbers<[1], [0], [0], [1], [0, 0, 1, 1], [], []>} : vector<16x32xf32>, vector<32x96xf32>, vector<16x96xf32> -> vector<16x96xf32>
    %28 = vector.broadcast %9 : vector<1x96xf32> to vector<16x96xf32>
    %29 = arith.addf %27, %28 : vector<16x96xf32>
    %30 = vector.extract_strided_slice %29 {offsets = [0, 0], sizes = [16, 32], strides = [1, 1]} : vector<16x96xf32> to vector<16x32xf32>
    %31 = vector.extract_strided_slice %29 {offsets = [0, 32], sizes = [16, 32], strides = [1, 1]} : vector<16x96xf32> to vector<16x32xf32>
    %32 = vector.extract_strided_slice %29 {offsets = [0, 64], sizes = [16, 32], strides = [1, 1]} : vector<16x96xf32> to vector<16x32xf32>
    %33 = tpu.transpose %31, [1, 0] : vector<16x32xf32> -> vector<32x16xf32>
    %34 = vector.extract_strided_slice %30 {offsets = [0, 0], sizes = [16, 8], strides = [1, 1]} : vector<16x32xf32> to vector<16x8xf32>
    %35 = vector.extract_strided_slice %33 {offsets = [0, 0], sizes = [8, 16], strides = [1, 1]} : vector<32x16xf32> to vector<8x16xf32>
    %36 = vector.extract_strided_slice %32 {offsets = [0, 0], sizes = [16, 8], strides = [1, 1]} : vector<16x32xf32> to vector<16x8xf32>
    %cst_13 = arith.constant dense<0.000000e+00> : vector<16x16xf32>
    %37 = tpu.matmul %34, %35, %cst_13 {dimension_numbers = #tpu.dot_dimension_numbers<[1], [0], [0], [1], [0, 0, 1, 1], [], []>} : vector<16x8xf32>, vector<8x16xf32>, vector<16x16xf32> -> vector<16x16xf32>
    %38 = arith.addf %37, %26 : vector<16x16xf32>
    %cst_14 = arith.constant dense<0xFF800000> : vector<16xf32>
    %39 = vector.multi_reduction <maximumf>, %38, %cst_14 [1] : vector<16x16xf32> to vector<16xf32>
    %40 = vector.shape_cast %39 : vector<16xf32> to vector<16x1xf32>
    %41 = vector.broadcast %40 : vector<16x1xf32> to vector<16x16xf32>
    %42 = arith.subf %38, %41 : vector<16x16xf32>
    %43 = math.exp %42 : vector<16x16xf32>
    %cst_15 = arith.constant dense<0.000000e+00> : vector<16xf32>
    %44 = vector.multi_reduction <add>, %43, %cst_15 [1] : vector<16x16xf32> to vector<16xf32>
    %45 = vector.shape_cast %44 : vector<16xf32> to vector<16x1xf32>
    %46 = tpu.reciprocal %45 : vector<16x1xf32> -> vector<16x1xf32>
    %47 = vector.broadcast %46 : vector<16x1xf32> to vector<16x16xf32>
    %48 = arith.mulf %43, %47 : vector<16x16xf32>
    %cst_16 = arith.constant dense<0.000000e+00> : vector<16x8xf32>
    %49 = tpu.matmul %48, %36, %cst_16 {dimension_numbers = #tpu.dot_dimension_numbers<[1], [0], [0], [1], [0, 0, 1, 1], [], []>} : vector<16x16xf32>, vector<16x8xf32>, vector<16x8xf32> -> vector<16x8xf32>
    %50 = vector.extract_strided_slice %30 {offsets = [0, 8], sizes = [16, 8], strides = [1, 1]} : vector<16x32xf32> to vector<16x8xf32>
    %51 = vector.extract_strided_slice %33 {offsets = [8, 0], sizes = [8, 16], strides = [1, 1]} : vector<32x16xf32> to vector<8x16xf32>
    %52 = vector.extract_strided_slice %32 {offsets = [0, 8], sizes = [16, 8], strides = [1, 1]} : vector<16x32xf32> to vector<16x8xf32>
    %cst_17 = arith.constant dense<0.000000e+00> : vector<16x16xf32>
    %53 = tpu.matmul %50, %51, %cst_17 {dimension_numbers = #tpu.dot_dimension_numbers<[1], [0], [0], [1], [0, 0, 1, 1], [], []>} : vector<16x8xf32>, vector<8x16xf32>, vector<16x16xf32> -> vector<16x16xf32>
    %54 = arith.addf %53, %26 : vector<16x16xf32>
    %cst_18 = arith.constant dense<0xFF800000> : vector<16xf32>
    %55 = vector.multi_reduction <maximumf>, %54, %cst_18 [1] : vector<16x16xf32> to vector<16xf32>
    %56 = vector.shape_cast %55 : vector<16xf32> to vector<16x1xf32>
    %57 = vector.broadcast %56 : vector<16x1xf32> to vector<16x16xf32>
    %58 = arith.subf %54, %57 : vector<16x16xf32>
    %59 = math.exp %58 : vector<16x16xf32>
    %cst_19 = arith.constant dense<0.000000e+00> : vector<16xf32>
    %60 = vector.multi_reduction <add>, %59, %cst_19 [1] : vector<16x16xf32> to vector<16xf32>
    %61 = vector.shape_cast %60 : vector<16xf32> to vector<16x1xf32>
    %62 = tpu.reciprocal %61 : vector<16x1xf32> -> vector<16x1xf32>
    %63 = vector.broadcast %62 : vector<16x1xf32> to vector<16x16xf32>
    %64 = arith.mulf %59, %63 : vector<16x16xf32>
    %cst_20 = arith.constant dense<0.000000e+00> : vector<16x8xf32>
    %65 = tpu.matmul %64, %52, %cst_20 {dimension_numbers = #tpu.dot_dimension_numbers<[1], [0], [0], [1], [0, 0, 1, 1], [], []>} : vector<16x16xf32>, vector<16x8xf32>, vector<16x8xf32> -> vector<16x8xf32>
    %66 = vector.extract_strided_slice %30 {offsets = [0, 16], sizes = [16, 8], strides = [1, 1]} : vector<16x32xf32> to vector<16x8xf32>
    %67 = vector.extract_strided_slice %33 {offsets = [16, 0], sizes = [8, 16], strides = [1, 1]} : vector<32x16xf32> to vector<8x16xf32>
    %68 = vector.extract_strided_slice %32 {offsets = [0, 16], sizes = [16, 8], strides = [1, 1]} : vector<16x32xf32> to vector<16x8xf32>
    %cst_21 = arith.constant dense<0.000000e+00> : vector<16x16xf32>
    %69 = tpu.matmul %66, %67, %cst_21 {dimension_numbers = #tpu.dot_dimension_numbers<[1], [0], [0], [1], [0, 0, 1, 1], [], []>} : vector<16x8xf32>, vector<8x16xf32>, vector<16x16xf32> -> vector<16x16xf32>
    %70 = arith.addf %69, %26 : vector<16x16xf32>
    %cst_22 = arith.constant dense<0xFF800000> : vector<16xf32>
    %71 = vector.multi_reduction <maximumf>, %70, %cst_22 [1] : vector<16x16xf32> to vector<16xf32>
    %72 = vector.shape_cast %71 : vector<16xf32> to vector<16x1xf32>
    %73 = vector.broadcast %72 : vector<16x1xf32> to vector<16x16xf32>
    %74 = arith.subf %70, %73 : vector<16x16xf32>
    %75 = math.exp %74 : vector<16x16xf32>
    %cst_23 = arith.constant dense<0.000000e+00> : vector<16xf32>
    %76 = vector.multi_reduction <add>, %75, %cst_23 [1] : vector<16x16xf32> to vector<16xf32>
    %77 = vector.shape_cast %76 : vector<16xf32> to vector<16x1xf32>
    %78 = tpu.reciprocal %77 : vector<16x1xf32> -> vector<16x1xf32>
    %79 = vector.broadcast %78 : vector<16x1xf32> to vector<16x16xf32>
    %80 = arith.mulf %75, %79 : vector<16x16xf32>
    %cst_24 = arith.constant dense<0.000000e+00> : vector<16x8xf32>
    %81 = tpu.matmul %80, %68, %cst_24 {dimension_numbers = #tpu.dot_dimension_numbers<[1], [0], [0], [1], [0, 0, 1, 1], [], []>} : vector<16x16xf32>, vector<16x8xf32>, vector<16x8xf32> -> vector<16x8xf32>
    %82 = vector.extract_strided_slice %30 {offsets = [0, 24], sizes = [16, 8], strides = [1, 1]} : vector<16x32xf32> to vector<16x8xf32>
    %83 = vector.extract_strided_slice %33 {offsets = [24, 0], sizes = [8, 16], strides = [1, 1]} : vector<32x16xf32> to vector<8x16xf32>
    %84 = vector.extract_strided_slice %32 {offsets = [0, 24], sizes = [16, 8], strides = [1, 1]} : vector<16x32xf32> to vector<16x8xf32>
    %cst_25 = arith.constant dense<0.000000e+00> : vector<16x16xf32>
    %85 = tpu.matmul %82, %83, %cst_25 {dimension_numbers = #tpu.dot_dimension_numbers<[1], [0], [0], [1], [0, 0, 1, 1], [], []>} : vector<16x8xf32>, vector<8x16xf32>, vector<16x16xf32> -> vector<16x16xf32>
    %86 = arith.addf %85, %26 : vector<16x16xf32>
    %cst_26 = arith.constant dense<0xFF800000> : vector<16xf32>
    %87 = vector.multi_reduction <maximumf>, %86, %cst_26 [1] : vector<16x16xf32> to vector<16xf32>
    %88 = vector.shape_cast %87 : vector<16xf32> to vector<16x1xf32>
    %89 = vector.broadcast %88 : vector<16x1xf32> to vector<16x16xf32>
    %90 = arith.subf %86, %89 : vector<16x16xf32>
    %91 = math.exp %90 : vector<16x16xf32>
    %cst_27 = arith.constant dense<0.000000e+00> : vector<16xf32>
    %92 = vector.multi_reduction <add>, %91, %cst_27 [1] : vector<16x16xf32> to vector<16xf32>
    %93 = vector.shape_cast %92 : vector<16xf32> to vector<16x1xf32>
    %94 = tpu.reciprocal %93 : vector<16x1xf32> -> vector<16x1xf32>
    %95 = vector.broadcast %94 : vector<16x1xf32> to vector<16x16xf32>
    %96 = arith.mulf %91, %95 : vector<16x16xf32>
    %cst_28 = arith.constant dense<0.000000e+00> : vector<16x8xf32>
    %97 = tpu.matmul %96, %84, %cst_28 {dimension_numbers = #tpu.dot_dimension_numbers<[1], [0], [0], [1], [0, 0, 1, 1], [], []>} : vector<16x16xf32>, vector<16x8xf32>, vector<16x8xf32> -> vector<16x8xf32>
    %98 = tpu.concatenate %49, %65, %81, %97 in 1 : vector<16x8xf32>, vector<16x8xf32>, vector<16x8xf32>, vector<16x8xf32> -> vector<16x32xf32>
    %cst_29 = arith.constant dense<0.000000e+00> : vector<16x32xf32>
    %99 = tpu.matmul %98, %5, %cst_29 {dimension_numbers = #tpu.dot_dimension_numbers<[1], [0], [0], [1], [0, 0, 1, 1], [], []>} : vector<16x32xf32>, vector<32x32xf32>, vector<16x32xf32> -> vector<16x32xf32>
    %100 = vector.broadcast %11 : vector<1x32xf32> to vector<16x32xf32>
    %101 = arith.addf %99, %100 : vector<16x32xf32>
    %102 = arith.addf %101, %0 : vector<16x32xf32>
    %103 = vector.extract_strided_slice %15 {offsets = [0, 0], sizes = [1, 32], strides = [1, 1]} : vector<3x32xf32> to vector<1x32xf32>
    %104 = vector.extract_strided_slice %16 {offsets = [0, 0], sizes = [1, 32], strides = [1, 1]} : vector<3x32xf32> to vector<1x32xf32>
    %cst_30 = arith.constant dense<0.000000e+00> : vector<16xf32>
    %105 = vector.multi_reduction <add>, %102, %cst_30 [1] : vector<16x32xf32> to vector<16xf32>
    %106 = vector.shape_cast %105 : vector<16xf32> to vector<16x1xf32>
    %cst_31 = arith.constant 3.200000e+01 : f32
    %107 = vector.broadcast %cst_31 : f32 to vector<16x1xf32>
    %108 = arith.divf %106, %107 : vector<16x1xf32>
    %109 = vector.broadcast %108 : vector<16x1xf32> to vector<16x32xf32>
    %110 = arith.subf %102, %109 : vector<16x32xf32>
    %111 = arith.mulf %110, %110 : vector<16x32xf32>
    %cst_32 = arith.constant dense<0.000000e+00> : vector<16xf32>
    %112 = vector.multi_reduction <add>, %111, %cst_32 [1] : vector<16x32xf32> to vector<16xf32>
    %113 = vector.shape_cast %112 : vector<16xf32> to vector<16x1xf32>
    %cst_33 = arith.constant 3.200000e+01 : f32
    %114 = vector.broadcast %cst_33 : f32 to vector<16x1xf32>
    %115 = arith.divf %113, %114 : vector<16x1xf32>
    %116 = vector.broadcast %108 : vector<16x1xf32> to vector<16x32xf32>
    %117 = arith.subf %102, %116 : vector<16x32xf32>
    %cst_34 = arith.constant 9.99999974E-6 : f32
    %118 = vector.broadcast %cst_34 : f32 to vector<16x1xf32>
    %119 = arith.addf %115, %118 : vector<16x1xf32>
    %120 = math.rsqrt %119 : vector<16x1xf32>
    %121 = vector.broadcast %120 : vector<16x1xf32> to vector<16x32xf32>
    %122 = arith.mulf %117, %121 : vector<16x32xf32>
    %123 = vector.broadcast %103 : vector<1x32xf32> to vector<16x32xf32>
    %124 = arith.mulf %122, %123 : vector<16x32xf32>
    %125 = vector.broadcast %104 : vector<1x32xf32> to vector<16x32xf32>
    %126 = arith.addf %124, %125 : vector<16x32xf32>
    %cst_35 = arith.constant dense<0.000000e+00> : vector<16x96xf32>
    %127 = tpu.matmul %126, %6, %cst_35 {dimension_numbers = #tpu.dot_dimension_numbers<[1], [0], [0], [1], [0, 0, 1, 1], [], []>} : vector<16x32xf32>, vector<32x96xf32>, vector<16x96xf32> -> vector<16x96xf32>
    %128 = vector.broadcast %10 : vector<1x96xf32> to vector<16x96xf32>
    %129 = arith.addf %127, %128 : vector<16x96xf32>
    %130 = vector.extract_strided_slice %129 {offsets = [0, 0], sizes = [16, 32], strides = [1, 1]} : vector<16x96xf32> to vector<16x32xf32>
    %131 = vector.extract_strided_slice %129 {offsets = [0, 32], sizes = [16, 32], strides = [1, 1]} : vector<16x96xf32> to vector<16x32xf32>
    %132 = vector.extract_strided_slice %129 {offsets = [0, 64], sizes = [16, 32], strides = [1, 1]} : vector<16x96xf32> to vector<16x32xf32>
    %133 = tpu.transpose %131, [1, 0] : vector<16x32xf32> -> vector<32x16xf32>
    %134 = vector.extract_strided_slice %130 {offsets = [0, 0], sizes = [16, 8], strides = [1, 1]} : vector<16x32xf32> to vector<16x8xf32>
    %135 = vector.extract_strided_slice %133 {offsets = [0, 0], sizes = [8, 16], strides = [1, 1]} : vector<32x16xf32> to vector<8x16xf32>
    %136 = vector.extract_strided_slice %132 {offsets = [0, 0], sizes = [16, 8], strides = [1, 1]} : vector<16x32xf32> to vector<16x8xf32>
    %cst_36 = arith.constant dense<0.000000e+00> : vector<16x16xf32>
    %137 = tpu.matmul %134, %135, %cst_36 {dimension_numbers = #tpu.dot_dimension_numbers<[1], [0], [0], [1], [0, 0, 1, 1], [], []>} : vector<16x8xf32>, vector<8x16xf32>, vector<16x16xf32> -> vector<16x16xf32>
    %138 = arith.addf %137, %26 : vector<16x16xf32>
    %cst_37 = arith.constant dense<0xFF800000> : vector<16xf32>
    %139 = vector.multi_reduction <maximumf>, %138, %cst_37 [1] : vector<16x16xf32> to vector<16xf32>
    %140 = vector.shape_cast %139 : vector<16xf32> to vector<16x1xf32>
    %141 = vector.broadcast %140 : vector<16x1xf32> to vector<16x16xf32>
    %142 = arith.subf %138, %141 : vector<16x16xf32>
    %143 = math.exp %142 : vector<16x16xf32>
    %cst_38 = arith.constant dense<0.000000e+00> : vector<16xf32>
    %144 = vector.multi_reduction <add>, %143, %cst_38 [1] : vector<16x16xf32> to vector<16xf32>
    %145 = vector.shape_cast %144 : vector<16xf32> to vector<16x1xf32>
    %146 = tpu.reciprocal %145 : vector<16x1xf32> -> vector<16x1xf32>
    %147 = vector.broadcast %146 : vector<16x1xf32> to vector<16x16xf32>
    %148 = arith.mulf %143, %147 : vector<16x16xf32>
    %cst_39 = arith.constant dense<0.000000e+00> : vector<16x8xf32>
    %149 = tpu.matmul %148, %136, %cst_39 {dimension_numbers = #tpu.dot_dimension_numbers<[1], [0], [0], [1], [0, 0, 1, 1], [], []>} : vector<16x16xf32>, vector<16x8xf32>, vector<16x8xf32> -> vector<16x8xf32>
    %150 = vector.extract_strided_slice %130 {offsets = [0, 8], sizes = [16, 8], strides = [1, 1]} : vector<16x32xf32> to vector<16x8xf32>
    %151 = vector.extract_strided_slice %133 {offsets = [8, 0], sizes = [8, 16], strides = [1, 1]} : vector<32x16xf32> to vector<8x16xf32>
    %152 = vector.extract_strided_slice %132 {offsets = [0, 8], sizes = [16, 8], strides = [1, 1]} : vector<16x32xf32> to vector<16x8xf32>
    %cst_40 = arith.constant dense<0.000000e+00> : vector<16x16xf32>
    %153 = tpu.matmul %150, %151, %cst_40 {dimension_numbers = #tpu.dot_dimension_numbers<[1], [0], [0], [1], [0, 0, 1, 1], [], []>} : vector<16x8xf32>, vector<8x16xf32>, vector<16x16xf32> -> vector<16x16xf32>
    %154 = arith.addf %153, %26 : vector<16x16xf32>
    %cst_41 = arith.constant dense<0xFF800000> : vector<16xf32>
    %155 = vector.multi_reduction <maximumf>, %154, %cst_41 [1] : vector<16x16xf32> to vector<16xf32>
    %156 = vector.shape_cast %155 : vector<16xf32> to vector<16x1xf32>
    %157 = vector.broadcast %156 : vector<16x1xf32> to vector<16x16xf32>
    %158 = arith.subf %154, %157 : vector<16x16xf32>
    %159 = math.exp %158 : vector<16x16xf32>
    %cst_42 = arith.constant dense<0.000000e+00> : vector<16xf32>
    %160 = vector.multi_reduction <add>, %159, %cst_42 [1] : vector<16x16xf32> to vector<16xf32>
    %161 = vector.shape_cast %160 : vector<16xf32> to vector<16x1xf32>
    %162 = tpu.reciprocal %161 : vector<16x1xf32> -> vector<16x1xf32>
    %163 = vector.broadcast %162 : vector<16x1xf32> to vector<16x16xf32>
    %164 = arith.mulf %159, %163 : vector<16x16xf32>
    %cst_43 = arith.constant dense<0.000000e+00> : vector<16x8xf32>
    %165 = tpu.matmul %164, %152, %cst_43 {dimension_numbers = #tpu.dot_dimension_numbers<[1], [0], [0], [1], [0, 0, 1, 1], [], []>} : vector<16x16xf32>, vector<16x8xf32>, vector<16x8xf32> -> vector<16x8xf32>
    %166 = vector.extract_strided_slice %130 {offsets = [0, 16], sizes = [16, 8], strides = [1, 1]} : vector<16x32xf32> to vector<16x8xf32>
    %167 = vector.extract_strided_slice %133 {offsets = [16, 0], sizes = [8, 16], strides = [1, 1]} : vector<32x16xf32> to vector<8x16xf32>
    %168 = vector.extract_strided_slice %132 {offsets = [0, 16], sizes = [16, 8], strides = [1, 1]} : vector<16x32xf32> to vector<16x8xf32>
    %cst_44 = arith.constant dense<0.000000e+00> : vector<16x16xf32>
    %169 = tpu.matmul %166, %167, %cst_44 {dimension_numbers = #tpu.dot_dimension_numbers<[1], [0], [0], [1], [0, 0, 1, 1], [], []>} : vector<16x8xf32>, vector<8x16xf32>, vector<16x16xf32> -> vector<16x16xf32>
    %170 = arith.addf %169, %26 : vector<16x16xf32>
    %cst_45 = arith.constant dense<0xFF800000> : vector<16xf32>
    %171 = vector.multi_reduction <maximumf>, %170, %cst_45 [1] : vector<16x16xf32> to vector<16xf32>
    %172 = vector.shape_cast %171 : vector<16xf32> to vector<16x1xf32>
    %173 = vector.broadcast %172 : vector<16x1xf32> to vector<16x16xf32>
    %174 = arith.subf %170, %173 : vector<16x16xf32>
    %175 = math.exp %174 : vector<16x16xf32>
    %cst_46 = arith.constant dense<0.000000e+00> : vector<16xf32>
    %176 = vector.multi_reduction <add>, %175, %cst_46 [1] : vector<16x16xf32> to vector<16xf32>
    %177 = vector.shape_cast %176 : vector<16xf32> to vector<16x1xf32>
    %178 = tpu.reciprocal %177 : vector<16x1xf32> -> vector<16x1xf32>
    %179 = vector.broadcast %178 : vector<16x1xf32> to vector<16x16xf32>
    %180 = arith.mulf %175, %179 : vector<16x16xf32>
    %cst_47 = arith.constant dense<0.000000e+00> : vector<16x8xf32>
    %181 = tpu.matmul %180, %168, %cst_47 {dimension_numbers = #tpu.dot_dimension_numbers<[1], [0], [0], [1], [0, 0, 1, 1], [], []>} : vector<16x16xf32>, vector<16x8xf32>, vector<16x8xf32> -> vector<16x8xf32>
    %182 = vector.extract_strided_slice %130 {offsets = [0, 24], sizes = [16, 8], strides = [1, 1]} : vector<16x32xf32> to vector<16x8xf32>
    %183 = vector.extract_strided_slice %133 {offsets = [24, 0], sizes = [8, 16], strides = [1, 1]} : vector<32x16xf32> to vector<8x16xf32>
    %184 = vector.extract_strided_slice %132 {offsets = [0, 24], sizes = [16, 8], strides = [1, 1]} : vector<16x32xf32> to vector<16x8xf32>
    %cst_48 = arith.constant dense<0.000000e+00> : vector<16x16xf32>
    %185 = tpu.matmul %182, %183, %cst_48 {dimension_numbers = #tpu.dot_dimension_numbers<[1], [0], [0], [1], [0, 0, 1, 1], [], []>} : vector<16x8xf32>, vector<8x16xf32>, vector<16x16xf32> -> vector<16x16xf32>
    %186 = arith.addf %185, %26 : vector<16x16xf32>
    %cst_49 = arith.constant dense<0xFF800000> : vector<16xf32>
    %187 = vector.multi_reduction <maximumf>, %186, %cst_49 [1] : vector<16x16xf32> to vector<16xf32>
    %188 = vector.shape_cast %187 : vector<16xf32> to vector<16x1xf32>
    %189 = vector.broadcast %188 : vector<16x1xf32> to vector<16x16xf32>
    %190 = arith.subf %186, %189 : vector<16x16xf32>
    %191 = math.exp %190 : vector<16x16xf32>
    %cst_50 = arith.constant dense<0.000000e+00> : vector<16xf32>
    %192 = vector.multi_reduction <add>, %191, %cst_50 [1] : vector<16x16xf32> to vector<16xf32>
    %193 = vector.shape_cast %192 : vector<16xf32> to vector<16x1xf32>
    %194 = tpu.reciprocal %193 : vector<16x1xf32> -> vector<16x1xf32>
    %195 = vector.broadcast %194 : vector<16x1xf32> to vector<16x16xf32>
    %196 = arith.mulf %191, %195 : vector<16x16xf32>
    %cst_51 = arith.constant dense<0.000000e+00> : vector<16x8xf32>
    %197 = tpu.matmul %196, %184, %cst_51 {dimension_numbers = #tpu.dot_dimension_numbers<[1], [0], [0], [1], [0, 0, 1, 1], [], []>} : vector<16x16xf32>, vector<16x8xf32>, vector<16x8xf32> -> vector<16x8xf32>
    %198 = tpu.concatenate %149, %165, %181, %197 in 1 : vector<16x8xf32>, vector<16x8xf32>, vector<16x8xf32>, vector<16x8xf32> -> vector<16x32xf32>
    %cst_52 = arith.constant dense<0.000000e+00> : vector<16x32xf32>
    %199 = tpu.matmul %198, %7, %cst_52 {dimension_numbers = #tpu.dot_dimension_numbers<[1], [0], [0], [1], [0, 0, 1, 1], [], []>} : vector<16x32xf32>, vector<32x32xf32>, vector<16x32xf32> -> vector<16x32xf32>
    %200 = vector.broadcast %12 : vector<1x32xf32> to vector<16x32xf32>
    %201 = arith.addf %199, %200 : vector<16x32xf32>
    %202 = arith.addf %201, %126 : vector<16x32xf32>
    %203 = vector.extract_strided_slice %15 {offsets = [1, 0], sizes = [1, 32], strides = [1, 1]} : vector<3x32xf32> to vector<1x32xf32>
    %204 = vector.extract_strided_slice %16 {offsets = [1, 0], sizes = [1, 32], strides = [1, 1]} : vector<3x32xf32> to vector<1x32xf32>
    %cst_53 = arith.constant dense<0.000000e+00> : vector<16xf32>
    %205 = vector.multi_reduction <add>, %202, %cst_53 [1] : vector<16x32xf32> to vector<16xf32>
    %206 = vector.shape_cast %205 : vector<16xf32> to vector<16x1xf32>
    %cst_54 = arith.constant 3.200000e+01 : f32
    %207 = vector.broadcast %cst_54 : f32 to vector<16x1xf32>
    %208 = arith.divf %206, %207 : vector<16x1xf32>
    %209 = vector.broadcast %208 : vector<16x1xf32> to vector<16x32xf32>
    %210 = arith.subf %202, %209 : vector<16x32xf32>
    %211 = arith.mulf %210, %210 : vector<16x32xf32>
    %cst_55 = arith.constant dense<0.000000e+00> : vector<16xf32>
    %212 = vector.multi_reduction <add>, %211, %cst_55 [1] : vector<16x32xf32> to vector<16xf32>
    %213 = vector.shape_cast %212 : vector<16xf32> to vector<16x1xf32>
    %cst_56 = arith.constant 3.200000e+01 : f32
    %214 = vector.broadcast %cst_56 : f32 to vector<16x1xf32>
    %215 = arith.divf %213, %214 : vector<16x1xf32>
    %216 = vector.broadcast %208 : vector<16x1xf32> to vector<16x32xf32>
    %217 = arith.subf %202, %216 : vector<16x32xf32>
    %cst_57 = arith.constant 9.99999974E-6 : f32
    %218 = vector.broadcast %cst_57 : f32 to vector<16x1xf32>
    %219 = arith.addf %215, %218 : vector<16x1xf32>
    %220 = math.rsqrt %219 : vector<16x1xf32>
    %221 = vector.broadcast %220 : vector<16x1xf32> to vector<16x32xf32>
    %222 = arith.mulf %217, %221 : vector<16x32xf32>
    %223 = vector.broadcast %203 : vector<1x32xf32> to vector<16x32xf32>
    %224 = arith.mulf %222, %223 : vector<16x32xf32>
    %225 = vector.broadcast %204 : vector<1x32xf32> to vector<16x32xf32>
    %226 = arith.addf %224, %225 : vector<16x32xf32>
    %cst_58 = arith.constant dense<0.000000e+00> : vector<16x128xf32>
    %227 = tpu.matmul %226, %8, %cst_58 {dimension_numbers = #tpu.dot_dimension_numbers<[1], [0], [0], [1], [0, 0, 1, 1], [], []>} : vector<16x32xf32>, vector<32x128xf32>, vector<16x128xf32> -> vector<16x128xf32>
    %228 = vector.broadcast %13 : vector<1x128xf32> to vector<16x128xf32>
    %229 = arith.addf %227, %228 : vector<16x128xf32>
    %cst_59 = arith.constant 0.000000e+00 : f32
    %230 = vector.broadcast %cst_59 : f32 to vector<16x128xf32>
    %231 = arith.maximumf %229, %230 : vector<16x128xf32>
    %cst_60 = arith.constant dense<0.000000e+00> : vector<16x32xf32>
    %232 = tpu.matmul %231, %2, %cst_60 {dimension_numbers = #tpu.dot_dimension_numbers<[1], [0], [0], [1], [0, 0, 1, 1], [], []>} : vector<16x128xf32>, vector<128x32xf32>, vector<16x32xf32> -> vector<16x32xf32>
    %233 = vector.broadcast %14 : vector<1x32xf32> to vector<16x32xf32>
    %234 = arith.addf %232, %233 : vector<16x32xf32>
    %235 = arith.addf %234, %226 : vector<16x32xf32>
    %236 = vector.extract_strided_slice %15 {offsets = [2, 0], sizes = [1, 32], strides = [1, 1]} : vector<3x32xf32> to vector<1x32xf32>
    %237 = vector.extract_strided_slice %16 {offsets = [2, 0], sizes = [1, 32], strides = [1, 1]} : vector<3x32xf32> to vector<1x32xf32>
    %cst_61 = arith.constant dense<0.000000e+00> : vector<16xf32>
    %238 = vector.multi_reduction <add>, %235, %cst_61 [1] : vector<16x32xf32> to vector<16xf32>
    %239 = vector.shape_cast %238 : vector<16xf32> to vector<16x1xf32>
    %cst_62 = arith.constant 3.200000e+01 : f32
    %240 = vector.broadcast %cst_62 : f32 to vector<16x1xf32>
    %241 = arith.divf %239, %240 : vector<16x1xf32>
    %242 = vector.broadcast %241 : vector<16x1xf32> to vector<16x32xf32>
    %243 = arith.subf %235, %242 : vector<16x32xf32>
    %244 = arith.mulf %243, %243 : vector<16x32xf32>
    %cst_63 = arith.constant dense<0.000000e+00> : vector<16xf32>
    %245 = vector.multi_reduction <add>, %244, %cst_63 [1] : vector<16x32xf32> to vector<16xf32>
    %246 = vector.shape_cast %245 : vector<16xf32> to vector<16x1xf32>
    %cst_64 = arith.constant 3.200000e+01 : f32
    %247 = vector.broadcast %cst_64 : f32 to vector<16x1xf32>
    %248 = arith.divf %246, %247 : vector<16x1xf32>
    %249 = vector.broadcast %241 : vector<16x1xf32> to vector<16x32xf32>
    %250 = arith.subf %235, %249 : vector<16x32xf32>
    %cst_65 = arith.constant 9.99999974E-6 : f32
    %251 = vector.broadcast %cst_65 : f32 to vector<16x1xf32>
    %252 = arith.addf %248, %251 : vector<16x1xf32>
    %253 = math.rsqrt %252 : vector<16x1xf32>
    %254 = vector.broadcast %253 : vector<16x1xf32> to vector<16x32xf32>
    %255 = arith.mulf %250, %254 : vector<16x32xf32>
    %256 = vector.broadcast %236 : vector<1x32xf32> to vector<16x32xf32>
    %257 = arith.mulf %255, %256 : vector<16x32xf32>
    %258 = vector.broadcast %237 : vector<1x32xf32> to vector<16x32xf32>
    %259 = arith.addf %257, %258 : vector<16x32xf32>
    %c0_66 = arith.constant 0 : index
    %c0_67 = arith.constant 0 : index
    %260 = vector.load %arg5[%c0_66, %c0_67] : memref<16x32xf32, #tpu.memory_space<vmem>>, vector<16x32xf32>
    tpu.vector_store %arg5[%c0_66, %c0_67], %259 {strides = array<i32>} : memref<16x32xf32, #tpu.memory_space<vmem>>, vector<16x32xf32>,
    return
  }
}

</mosaic_0001>

<llo_original>
// kernel: decoder_block.1
$region0: #{decoder_block.1}
  #allocation0 [shape = 'u32[]', space=smem, size = 0x4, offset = 0x4, fixed_abs, tag = 'smem constant byte address 0x4 - core index']
  #allocation1 [shape = 'u32[144,128]{1,0:T(1,128)}', space=vmem, size = 0x12000, scoped, tag = 'internal scratch']
  %s0 = inlined_call_operand.vmem [shape: f32[16,32], index: 0, kind: input, shape index: {}]
  %s1 = inlined_call_operand.vmem [shape: f32[8,8], index: 1, kind: input, shape index: {}]
  %s2 = inlined_call_operand.vmem [shape: f32[32,384], index: 2, kind: input, shape index: {}]
  %s3 = inlined_call_operand.vmem [shape: f32[128,32], index: 3, kind: input, shape index: {}]
  %s4 = inlined_call_operand.vmem [shape: f32[12,128], index: 4, kind: input, shape index: {}]
  %s5 = inlined_call_operand.hbm [shape: f32[16,32], index: 5, kind: output, shape index: {}]
  %s6 = sld [smem:[#allocation0]]
  $region30: #{decoder_block.1} parent=0
    _
  %s8 = ssub.s32 1, %s6
  %s9 = scalar_select 0, %s8, %s6
  $region1: #{decoder_block.1} parent=0
    #allocation2 [shape = 'u8[8192]{0}', space=vmem, size = 0x2000, scoped, tag = 'output window, operand 0, single buffered']
    #allocation3 [shape = 's32[1]{0}', space=sflag, size = 0x4, scoped, tag = 'scoped memory for decoder_block.1']
    %10 = vsyncpa [#allocation3], 0
    // Predicated region
    $region2: #{decoder_block.1} parent=1 // pred_check
      _
    $region3: #{decoder_block.1} parent=1 // pred_check_branch
      %12 = sbr.rel (0) target = $region5
    $region4: #{decoder_block.1} parent=1 // pred_region
      _
    $region5: #{decoder_block.1} parent=1 // pred_fallthru
      _
    // Predicated region
    $region6: #{decoder_block.1} parent=1 // pred_check
      _
    $region7: #{decoder_block.1} parent=1 // pred_check_branch
      %14 = sbr.rel (0) target = $region9
    $region8: #{decoder_block.1} parent=1 // pred_region
      _
    $region9: #{decoder_block.1} parent=1 // pred_fallthru
      _
    // Predicated region
    $region10: #{decoder_block.1} parent=1 // pred_check
      _
    $region11: #{decoder_block.1} parent=1 // pred_check_branch
      %16 = sbr.rel (0) target = $region13
    $region12: #{decoder_block.1} parent=1 // pred_region
      _
    $region13: #{decoder_block.1} parent=1 // pred_fallthru
      _
    // Predicated region
    $region14: #{decoder_block.1} parent=1 // pred_check
      _
    $region15: #{decoder_block.1} parent=1 // pred_check_branch
      %18 = sbr.rel (0) target = $region17
    $region16: #{decoder_block.1} parent=1 // pred_region
      _
    $region17: #{decoder_block.1} parent=1 // pred_fallthru
      _
    // Predicated region
    $region18: #{decoder_block.1} parent=1 // pred_check
      _
    $region19: #{decoder_block.1} parent=1 // pred_check_branch
      %20 = sbr.rel (0) target = $region21
    $region20: #{decoder_block.1} parent=1 // pred_region
      _
    $region21: #{decoder_block.1} parent=1 // pred_fallthru
      _
    %v21 = vld [vmem:[%s0] sm:$0xff]
    %v22 = vld [vmem:[%s0 + $0x8] sm:$0xff]
    %v23 = vld [vmem:[%s2] sm:$0xff]
    %v24 = vld [vmem:[%s2 + $0x8] sm:$0xff]
    %v25 = vld [vmem:[%s2 + $0x10] sm:$0xff]
    %v26 = vld [vmem:[%s2 + $0x18] sm:$0xff]
    %v27 = vld [vmem:[%s2 + $0x20] sm:$0xff]
    %v28 = vld [vmem:[%s2 + $0x28] sm:$0xff]
    %v29 = vld [vmem:[%s2 + $0x30] sm:$0xff]
    %v30 = vld [vmem:[%s2 + $0x38] sm:$0xff]
    %v31 = vld [vmem:[%s2 + $0x40] sm:$0xff]
    %v32 = vld [vmem:[%s2 + $0x48] sm:$0xff]
    %v33 = vld [vmem:[%s2 + $0x50] sm:$0xff]
    %v34 = vld [vmem:[%s2 + $0x58] sm:$0xff]
    %v35 = vld [vmem:[%s3] sm:$0xff]
    %v36 = vld [vmem:[%s3 + $0x8] sm:$0xff]
    %v37 = vld [vmem:[%s3 + $0x10] sm:$0xff]
    %v38 = vld [vmem:[%s3 + $0x18] sm:$0xff]
    %v39 = vld [vmem:[%s3 + $0x20] sm:$0xff]
    %v40 = vld [vmem:[%s3 + $0x28] sm:$0xff]
    %v41 = vld [vmem:[%s3 + $0x30] sm:$0xff]
    %v42 = vld [vmem:[%s3 + $0x38] sm:$0xff]
    %v43 = vld [vmem:[%s3 + $0x40] sm:$0xff]
    %v44 = vld [vmem:[%s3 + $0x48] sm:$0xff]
    %v45 = vld [vmem:[%s3 + $0x50] sm:$0xff]
    %v46 = vld [vmem:[%s3 + $0x58] sm:$0xff]
    %v47 = vld [vmem:[%s3 + $0x60] sm:$0xff]
    %v48 = vld [vmem:[%s3 + $0x68] sm:$0xff]
    %v49 = vld [vmem:[%s3 + $0x70] sm:$0xff]
    %v50 = vld [vmem:[%s3 + $0x78] sm:$0xff]
    %v51 = vld [vmem:[%s4] sm:$0xff]
    %v52 = vld [vmem:[%s4 + $0x8] sm:$0xf]
    %v53 = vld [vmem:[%s1] sm:$0xff]
    %vm54 = vcmp.eq.f32.partialorder %v53, 0.0
    %v55 = vsel %vm54, -1e+20, 0.0
    %vm56 = vcmask 64512
    %v57 = vsel %vm56, %v55, -1e+20
    %59 = vrot.lane.b32.xlu0 %v55, 8
    %v60 = vpop.permute.xlu0 %59
    %v62 = vsel %vm56, -1e+20, %v60
    %v63 = vlaneseq
    %v64 = vshrl.u32 %v63, 7
    %v65 = vsub.s32 0, %v64
    %v66 = vrot.slane %v51, %v65
    %vm67 = vcmask 261120
    %v69 = vsel %vm67, %v21, 0
    %v72 = vsel %vm67, %v22, 0
    %74 = vmatprep.subr.mxu0 0.0
    %75 = vmatpush1.msra.mxu0 0.0
    %76 = vmatprep.subr.mxu0 0.0
    %77 = vmatpush1.msra.mxu0 0.0
    %78 = vmatprep.subr.mxu0 0.0
    %79 = vmatpush1.msra.mxu0 0.0
    %80 = vmatprep.subr.mxu0 0.0
    %81 = vmatpush1.msra.mxu0 0.0
    %82 = vmatprep.subr.mxu0 0.0
    %83 = vmatpush1.msra.mxu0 0.0
    %84 = vmatprep.subr.mxu0 0.0
    %85 = vmatpush1.msra.mxu0 0.0
    %86 = vmatprep.subr.mxu0 0.0
    %87 = vmatpush1.msra.mxu0 0.0
    %88 = vmatprep.subr.mxu0 0.0
    %89 = vmatpush1.msra.mxu0 0.0
    %90 = vmatprep.subr.mxu0 0.0
    %91 = vmatpush1.msra.mxu0 0.0
    %92 = vmatprep.subr.mxu0 0.0
    %93 = vmatpush1.msra.mxu0 0.0
    %94 = vmatprep.subr.mxu0 0.0
    %95 = vmatpush1.msra.mxu0 0.0
    %96 = vmatprep.subr.mxu0 0.0
    %97 = vmatpush1.msra.mxu0 0.0
    %98 = vmatprep.subr.mxu0 0.0
    %99 = vmatpush1.msra.mxu0 %v32
    %100 = vmatprep.subr.mxu0 0.0
    %101 = vmatpush1.msra.mxu0 %v29
    %102 = vmatprep.subr.mxu0 0.0
    %103 = vmatpush1.msra.mxu0 %v26
    %104 = vmatprep.subr.mxu0 0.0
    %105 = vmatpush1.msra.mxu0 %v23
    %106 = vmatprep.subr.mxu0 0.0
    %107 = vmatpush2.msra.mxu0 0.0
    %108 = vmatprep.subr.mxu0 0.0
    %109 = vmatpush2.msra.mxu0 0.0
    %110 = vmatprep.subr.mxu0 0.0
    %111 = vmatpush2.msra.mxu0 0.0
    %112 = vmatprep.subr.mxu0 0.0
    %113 = vmatpush2.msra.mxu0 0.0
    %114 = vmatprep.subr.mxu0 0.0
    %115 = vmatpush2.msra.mxu0 0.0
    %116 = vmatprep.subr.mxu0 0.0
    %117 = vmatpush2.msra.mxu0 0.0
    %118 = vmatprep.subr.mxu0 0.0
    %119 = vmatpush2.msra.mxu0 0.0
    %120 = vmatprep.subr.mxu0 0.0
    %121 = vmatpush2.msra.mxu0 0.0
    %122 = vmatprep.subr.mxu0 0.0
    %123 = vmatpush2.msra.mxu0 0.0
    %124 = vmatprep.subr.mxu0 0.0
    %125 = vmatpush2.msra.mxu0 0.0
    %126 = vmatprep.subr.mxu0 0.0
    %127 = vmatpush2.msra.mxu0 0.0
    %128 = vmatprep.subr.mxu0 0.0
    %129 = vmatpush2.msra.mxu0 0.0
    %130 = vmatprep.subr.mxu0 0.0
    %131 = vmatpush2.msra.mxu0 0.0
    %132 = vmatprep.subr.mxu0 0.0
    %133 = vmatpush2.msra.mxu0 0.0
    %134 = vmatprep.subr.mxu0 0.0
    %135 = vmatpush2.msra.mxu0 0.0
    %136 = vmatprep.subr.mxu0 0.0
    %137 = vmatpush2.msra.mxu0 0.0
    %138 = vmatprep.mubr.f32.mxu0 0.0
    %139 = vmatmul.mubr.f32.gmra.mxu0 %v69
    %v140 = vpop.f32.mrf.mxu0
    %v141 = vadd.f32 %v66, %v140
    %v142 = vpop.f32.mrf.mxu0
    %143 = vmatprep.mubr.f32.mxu0 0.0
    %144 = vmatmul.mubr.f32.gmra.mxu0 %v72
    %v145 = vpop.f32.mrf.mxu0
    %v146 = vadd.f32 %v66, %v145
    %v147 = vpop.f32.mrf.mxu0
    %148 = vdwg.mxu0
    %151 = vrot.lane.b32.xlu0 %v141, 96
    %v152 = vpop.permute.xlu0 %151
    %153 = vrot.lane.b32.xlu0 %v146, 96
    %v154 = vpop.permute.xlu0 %153
    %v155 = vsel %vm56, %v141, 0
    %v157 = vsel %vm56, %v146, 0
    %v159 = vsel %vm56, %v152, 0
    %v161 = vsel %vm56, %v154, 0
    %163 = vmatprep.subr.mxu0 0.0
    %164 = vmatpush1.xpose.msra.mxu0 0.0
    %165 = vmatprep.subr.mxu0 0.0
    %166 = vmatpush1.xpose.msra.mxu0 0.0
    %167 = vmatprep.subr.mxu0 0.0
    %168 = vmatpush1.xpose.msra.mxu0 0.0
    %169 = vmatprep.subr.mxu0 0.0
    %170 = vmatpush1.xpose.msra.mxu0 0.0
    %171 = vmatprep.subr.mxu0 0.0
    %172 = vmatpush1.xpose.msra.mxu0 0.0
    %173 = vmatprep.subr.mxu0 0.0
    %174 = vmatpush1.xpose.msra.mxu0 0.0
    %175 = vmatprep.subr.mxu0 0.0
    %176 = vmatpush1.xpose.msra.mxu0 0.0
    %177 = vmatprep.subr.mxu0 0.0
    %178 = vmatpush1.xpose.msra.mxu0 0.0
    %179 = vmatprep.subr.mxu0 0.0
    %180 = vmatpush1.xpose.msra.mxu0 0.0
    %181 = vmatprep.subr.mxu0 0.0
    %182 = vmatpush1.xpose.msra.mxu0 0.0
    %183 = vmatprep.subr.mxu0 0.0
    %184 = vmatpush1.xpose.msra.mxu0 0.0
    %185 = vmatprep.subr.mxu0 0.0
    %186 = vmatpush1.xpose.msra.mxu0 0.0
    %187 = vmatprep.subr.mxu0 0.0
    %188 = vmatpush1.xpose.msra.mxu0 0.0
    %189 = vmatprep.subr.mxu0 0.0
    %190 = vmatpush1.xpose.msra.mxu0 0.0
    %191 = vmatprep.subr.mxu0 0.0
    %192 = vmatpush1.xpose.msra.mxu0 %v161
    %193 = vmatprep.subr.mxu0 0.0
    %194 = vmatpush1.xpose.msra.mxu0 %v159
    %195 = vmatprep.subr.mxu0 0.0
    %196 = vmatpush2.xpose.msra.mxu0 0.0
    %197 = vmatprep.subr.mxu0 0.0
    %198 = vmatpush2.xpose.msra.mxu0 0.0
    %199 = vmatprep.subr.mxu0 0.0
    %200 = vmatpush2.xpose.msra.mxu0 0.0
    %201 = vmatprep.subr.mxu0 0.0
    %202 = vmatpush2.xpose.msra.mxu0 0.0
    %203 = vmatprep.subr.mxu0 0.0
    %204 = vmatpush2.xpose.msra.mxu0 0.0
    %205 = vmatprep.subr.mxu0 0.0
    %206 = vmatpush2.xpose.msra.mxu0 0.0
    %207 = vmatprep.subr.mxu0 0.0
    %208 = vmatpush2.xpose.msra.mxu0 0.0
    %209 = vmatprep.subr.mxu0 0.0
    %210 = vmatpush2.xpose.msra.mxu0 0.0
    %211 = vmatprep.subr.mxu0 0.0
    %212 = vmatpush2.xpose.msra.mxu0 0.0
    %213 = vmatprep.subr.mxu0 0.0
    %214 = vmatpush2.xpose.msra.mxu0 0.0
    %215 = vmatprep.subr.mxu0 0.0
    %216 = vmatpush2.xpose.msra.mxu0 0.0
    %217 = vmatprep.subr.mxu0 0.0
    %218 = vmatpush2.xpose.msra.mxu0 0.0
    %219 = vmatprep.subr.mxu0 0.0
    %220 = vmatpush2.xpose.msra.mxu0 0.0
    %221 = vmatprep.subr.mxu0 0.0
    %222 = vmatpush2.xpose.msra.mxu0 0.0
    %223 = vmatprep.subr.mxu0 0.0
    %224 = vmatpush2.xpose.msra.mxu0 0.0
    %225 = vmatprep.subr.mxu0 0.0
    %226 = vmatpush2.xpose.msra.mxu0 0.0
    %227 = vmatprep.mubr.f32.mxu0 0.0
    %228 = vmatmul.mubr.f32.gmra.mxu0 %v155
    %v229 = vpop.f32.mrf.mxu0
    %v230 = vadd.f32 %v57, %v229
    %v231 = vpop.f32.mrf.mxu0
    %232 = vmatprep.mubr.f32.mxu0 0.0
    %233 = vmatmul.mubr.f32.gmra.mxu0 %v157
    %v234 = vpop.f32.mrf.mxu0
    %v235 = vadd.f32 %v62, %v234
    %v236 = vpop.f32.mrf.mxu0
    %237 = vdwg.mxu0
    %vm238 = vcmask 130048
    %v239 = vsel %vm238, %v230, -inf
    %240 = vmax.xlane.f32.xlu0 %v239
    %v241 = vpop.xlane.xlu0 %240
    %v242 = vsel %vm238, %v235, -inf
    %243 = vmax.xlane.f32.xlu0 %v242
    %v244 = vpop.xlane.xlu0 %243
    %v245 = vsub.f32 %v230, %v241
    %v246 = vsub.f32 %v235, %v244
    %v247 = vmul.f32 %v245, 1.442695
    %v248 = vpow.pop %v247
    %v249 = vmul.f32 %v246, 1.442695
    %v250 = vpow.pop %v249
    %v251 = vsel %vm238, %v248, 0.0
    %252 = vadd.xlane.f32.xlu0 %v251
    %v253 = vpop.xlane.xlu0 %252
    %v254 = vsel %vm238, %v250, 0.0
    %255 = vadd.xlane.f32.xlu0 %v254
    %v256 = vpop.xlane.xlu0 %255
    %v257 = vrcp.pop %v253
    %v258 = vrcp.pop %v256
    %v259 = vmul.f32 %v248, %v257
    %v260 = vmul.f32 %v250, %v258
    %261 = vrot.lane.b32.xlu0 %v141, 64
    %v262 = vpop.permute.xlu0 %261
    %263 = vrot.lane.b32.xlu0 %v146, 64
    %v264 = vpop.permute.xlu0 %263
    %v268 = vsel %vm238, %v259, 0
    %v271 = vsel %vm238, %v260, 0
    %273 = vmatprep.subr.mxu0 0.0
    %274 = vmatpush1.msra.mxu0 0.0
    %275 = vmatprep.subr.mxu0 0.0
    %276 = vmatpush1.msra.mxu0 0.0
    %277 = vmatprep.subr.mxu0 0.0
    %278 = vmatpush1.msra.mxu0 0.0
    %279 = vmatprep.subr.mxu0 0.0
    %280 = vmatpush1.msra.mxu0 0.0
    %281 = vmatprep.subr.mxu0 0.0
    %282 = vmatpush1.msra.mxu0 0.0
    %283 = vmatprep.subr.mxu0 0.0
    %284 = vmatpush1.msra.mxu0 0.0
    %285 = vmatprep.subr.mxu0 0.0
    %286 = vmatpush1.msra.mxu0 0.0
    %287 = vmatprep.subr.mxu0 0.0
    %288 = vmatpush1.msra.mxu0 0.0
    %289 = vmatprep.subr.mxu0 0.0
    %290 = vmatpush1.msra.mxu0 0.0
    %291 = vmatprep.subr.mxu0 0.0
    %292 = vmatpush1.msra.mxu0 0.0
    %293 = vmatprep.subr.mxu0 0.0
    %294 = vmatpush1.msra.mxu0 0.0
    %295 = vmatprep.subr.mxu0 0.0
    %296 = vmatpush1.msra.mxu0 0.0
    %297 = vmatprep.subr.mxu0 0.0
    %298 = vmatpush1.msra.mxu0 0.0
    %299 = vmatprep.subr.mxu0 0.0
    %300 = vmatpush1.msra.mxu0 0.0
    %301 = vmatprep.subr.mxu0 0.0
    %302 = vmatpush1.msra.mxu0 %v264
    %303 = vmatprep.subr.mxu0 0.0
    %304 = vmatpush1.msra.mxu0 %v262
    %305 = vmatprep.subr.mxu0 0.0
    %306 = vmatpush2.msra.mxu0 0.0
    %307 = vmatprep.subr.mxu0 0.0
    %308 = vmatpush2.msra.mxu0 0.0
    %309 = vmatprep.subr.mxu0 0.0
    %310 = vmatpush2.msra.mxu0 0.0
    %311 = vmatprep.subr.mxu0 0.0
    %312 = vmatpush2.msra.mxu0 0.0
    %313 = vmatprep.subr.mxu0 0.0
    %314 = vmatpush2.msra.mxu0 0.0
    %315 = vmatprep.subr.mxu0 0.0
    %316 = vmatpush2.msra.mxu0 0.0
    %317 = vmatprep.subr.mxu0 0.0
    %318 = vmatpush2.msra.mxu0 0.0
    %319 = vmatprep.subr.mxu0 0.0
    %320 = vmatpush2.msra.mxu0 0.0
    %321 = vmatprep.subr.mxu0 0.0
    %322 = vmatpush2.msra.mxu0 0.0
    %323 = vmatprep.subr.mxu0 0.0
    %324 = vmatpush2.msra.mxu0 0.0
    %325 = vmatprep.subr.mxu0 0.0
    %326 = vmatpush2.msra.mxu0 0.0
    %327 = vmatprep.subr.mxu0 0.0
    %328 = vmatpush2.msra.mxu0 0.0
    %329 = vmatprep.subr.mxu0 0.0
    %330 = vmatpush2.msra.mxu0 0.0
    %331 = vmatprep.subr.mxu0 0.0
    %332 = vmatpush2.msra.mxu0 0.0
    %333 = vmatprep.subr.mxu0 0.0
    %334 = vmatpush2.msra.mxu0 0.0
    %335 = vmatprep.subr.mxu0 0.0
    %336 = vmatpush2.msra.mxu0 0.0
    %337 = vmatprep.mubr.f32.mxu0 0.0
    %338 = vmatmul.mubr.f32.gmra.mxu0 %v268
    %v339 = vpop.f32.mrf.mxu0
    %v340 = vadd.f32 0.0, %v339
    %v341 = vpop.f32.mrf.mxu0
    %342 = vmatprep.mubr.f32.mxu0 0.0
    %343 = vmatmul.mubr.f32.gmra.mxu0 %v271
    %v344 = vpop.f32.mrf.mxu0
    %v345 = vadd.f32 0.0, %v344
    %v346 = vpop.f32.mrf.mxu0
    %347 = vdwg.mxu0
    %348 = vrot.lane.b32.xlu0 %v141, 120
    %v349 = vpop.permute.xlu0 %348
    %350 = vrot.lane.b32.xlu0 %v146, 120
    %v351 = vpop.permute.xlu0 %350
    %352 = vrot.lane.b32.xlu0 %v141, 88
    %v353 = vpop.permute.xlu0 %352
    %354 = vrot.lane.b32.xlu0 %v146, 88
    %v355 = vpop.permute.xlu0 %354
    %v356 = vsel %vm56, %v349, 0
    %v358 = vsel %vm56, %v351, 0
    %v360 = vsel %vm56, %v353, 0
    %v362 = vsel %vm56, %v355, 0
    %364 = vmatprep.subr.mxu0 0.0
    %365 = vmatpush1.xpose.msra.mxu0 0.0
    %366 = vmatprep.subr.mxu0 0.0
    %367 = vmatpush1.xpose.msra.mxu0 0.0
    %368 = vmatprep.subr.mxu0 0.0
    %369 = vmatpush1.xpose.msra.mxu0 0.0
    %370 = vmatprep.subr.mxu0 0.0
    %371 = vmatpush1.xpose.msra.mxu0 0.0
    %372 = vmatprep.subr.mxu0 0.0
    %373 = vmatpush1.xpose.msra.mxu0 0.0
    %374 = vmatprep.subr.mxu0 0.0
    %375 = vmatpush1.xpose.msra.mxu0 0.0
    %376 = vmatprep.subr.mxu0 0.0
    %377 = vmatpush1.xpose.msra.mxu0 0.0
    %378 = vmatprep.subr.mxu0 0.0
    %379 = vmatpush1.xpose.msra.mxu0 0.0
    %380 = vmatprep.subr.mxu0 0.0
    %381 = vmatpush1.xpose.msra.mxu0 0.0
    %382 = vmatprep.subr.mxu0 0.0
    %383 = vmatpush1.xpose.msra.mxu0 0.0
    %384 = vmatprep.subr.mxu0 0.0
    %385 = vmatpush1.xpose.msra.mxu0 0.0
    %386 = vmatprep.subr.mxu0 0.0
    %387 = vmatpush1.xpose.msra.mxu0 0.0
    %388 = vmatprep.subr.mxu0 0.0
    %389 = vmatpush1.xpose.msra.mxu0 0.0
    %390 = vmatprep.subr.mxu0 0.0
    %391 = vmatpush1.xpose.msra.mxu0 0.0
    %392 = vmatprep.subr.mxu0 0.0
    %393 = vmatpush1.xpose.msra.mxu0 %v362
    %394 = vmatprep.subr.mxu0 0.0
    %395 = vmatpush1.xpose.msra.mxu0 %v360
    %396 = vmatprep.subr.mxu0 0.0
    %397 = vmatpush2.xpose.msra.mxu0 0.0
    %398 = vmatprep.subr.mxu0 0.0
    %399 = vmatpush2.xpose.msra.mxu0 0.0
    %400 = vmatprep.subr.mxu0 0.0
    %401 = vmatpush2.xpose.msra.mxu0 0.0
    %402 = vmatprep.subr.mxu0 0.0
    %403 = vmatpush2.xpose.msra.mxu0 0.0
    %404 = vmatprep.subr.mxu0 0.0
    %405 = vmatpush2.xpose.msra.mxu0 0.0
    %406 = vmatprep.subr.mxu0 0.0
    %407 = vmatpush2.xpose.msra.mxu0 0.0
    %408 = vmatprep.subr.mxu0 0.0
    %409 = vmatpush2.xpose.msra.mxu0 0.0
    %410 = vmatprep.subr.mxu0 0.0
    %411 = vmatpush2.xpose.msra.mxu0 0.0
    %412 = vmatprep.subr.mxu0 0.0
    %413 = vmatpush2.xpose.msra.mxu0 0.0
    %414 = vmatprep.subr.mxu0 0.0
    %415 = vmatpush2.xpose.msra.mxu0 0.0
    %416 = vmatprep.subr.mxu0 0.0
    %417 = vmatpush2.xpose.msra.mxu0 0.0
    %418 = vmatprep.subr.mxu0 0.0
    %419 = vmatpush2.xpose.msra.mxu0 0.0
    %420 = vmatprep.subr.mxu0 0.0
    %421 = vmatpush2.xpose.msra.mxu0 0.0
    %422 = vmatprep.subr.mxu0 0.0
    %423 = vmatpush2.xpose.msra.mxu0 0.0
    %424 = vmatprep.subr.mxu0 0.0
    %425 = vmatpush2.xpose.msra.mxu0 0.0
    %426 = vmatprep.subr.mxu0 0.0
    %427 = vmatpush2.xpose.msra.mxu0 0.0
    %428 = vmatprep.mubr.f32.mxu0 0.0
    %429 = vmatmul.mubr.f32.gmra.mxu0 %v356
    %v430 = vpop.f32.mrf.mxu0
    %v431 = vadd.f32 %v57, %v430
    %v432 = vpop.f32.mrf.mxu0
    %433 = vmatprep.mubr.f32.mxu0 0.0
    %434 = vmatmul.mubr.f32.gmra.mxu0 %v358
    %v435 = vpop.f32.mrf.mxu0
    %v436 = vadd.f32 %v62, %v435
    %v437 = vpop.f32.mrf.mxu0
    %438 = vdwg.mxu0
    %v439 = vsel %vm238, %v431, -inf
    %440 = vmax.xlane.f32.xlu0 %v439
    %v441 = vpop.xlane.xlu0 %440
    %v442 = vsel %vm238, %v436, -inf
    %443 = vmax.xlane.f32.xlu0 %v442
    %v444 = vpop.xlane.xlu0 %443
    %v445 = vsub.f32 %v431, %v441
    %v446 = vsub.f32 %v436, %v444
    %v447 = vmul.f32 %v445, 1.442695
    %v448 = vpow.pop %v447
    %v449 = vmul.f32 %v446, 1.442695
    %v450 = vpow.pop %v449
    %v451 = vsel %vm238, %v448, 0.0
    %452 = vadd.xlane.f32.xlu0 %v451
    %v453 = vpop.xlane.xlu0 %452
    %v454 = vsel %vm238, %v450, 0.0
    %455 = vadd.xlane.f32.xlu0 %v454
    %v456 = vpop.xlane.xlu0 %455
    %v457 = vrcp.pop %v453
    %v458 = vrcp.pop %v456
    %v459 = vmul.f32 %v448, %v457
    %v460 = vmul.f32 %v450, %v458
    %461 = vrot.lane.b32.xlu0 %v141, 56
    %v462 = vpop.permute.xlu0 %461
    %463 = vrot.lane.b32.xlu0 %v146, 56
    %v464 = vpop.permute.xlu0 %463
    %v468 = vsel %vm238, %v459, 0
    %v471 = vsel %vm238, %v460, 0
    %473 = vmatprep.subr.mxu0 0.0
    %474 = vmatpush1.msra.mxu0 0.0
    %475 = vmatprep.subr.mxu0 0.0
    %476 = vmatpush1.msra.mxu0 0.0
    %477 = vmatprep.subr.mxu0 0.0
    %478 = vmatpush1.msra.mxu0 0.0
    %479 = vmatprep.subr.mxu0 0.0
    %480 = vmatpush1.msra.mxu0 0.0
    %481 = vmatprep.subr.mxu0 0.0
    %482 = vmatpush1.msra.mxu0 0.0
    %483 = vmatprep.subr.mxu0 0.0
    %484 = vmatpush1.msra.mxu0 0.0
    %485 = vmatprep.subr.mxu0 0.0
    %486 = vmatpush1.msra.mxu0 0.0
    %487 = vmatprep.subr.mxu0 0.0
    %488 = vmatpush1.msra.mxu0 0.0
    %489 = vmatprep.subr.mxu0 0.0
    %490 = vmatpush1.msra.mxu0 0.0
    %491 = vmatprep.subr.mxu0 0.0
    %492 = vmatpush1.msra.mxu0 0.0
    %493 = vmatprep.subr.mxu0 0.0
    %494 = vmatpush1.msra.mxu0 0.0
    %495 = vmatprep.subr.mxu0 0.0
    %496 = vmatpush1.msra.mxu0 0.0
    %497 = vmatprep.subr.mxu0 0.0
    %498 = vmatpush1.msra.mxu0 0.0
    %499 = vmatprep.subr.mxu0 0.0
    %500 = vmatpush1.msra.mxu0 0.0
    %501 = vmatprep.subr.mxu0 0.0
    %502 = vmatpush1.msra.mxu0 %v464
    %503 = vmatprep.subr.mxu0 0.0
    %504 = vmatpush1.msra.mxu0 %v462
    %505 = vmatprep.subr.mxu0 0.0
    %506 = vmatpush2.msra.mxu0 0.0
    %507 = vmatprep.subr.mxu0 0.0
    %508 = vmatpush2.msra.mxu0 0.0
    %509 = vmatprep.subr.mxu0 0.0
    %510 = vmatpush2.msra.mxu0 0.0
    %511 = vmatprep.subr.mxu0 0.0
    %512 = vmatpush2.msra.mxu0 0.0
    %513 = vmatprep.subr.mxu0 0.0
    %514 = vmatpush2.msra.mxu0 0.0
    %515 = vmatprep.subr.mxu0 0.0
    %516 = vmatpush2.msra.mxu0 0.0
    %517 = vmatprep.subr.mxu0 0.0
    %518 = vmatpush2.msra.mxu0 0.0
    %519 = vmatprep.subr.mxu0 0.0
    %520 = vmatpush2.msra.mxu0 0.0
    %521 = vmatprep.subr.mxu0 0.0
    %522 = vmatpush2.msra.mxu0 0.0
    %523 = vmatprep.subr.mxu0 0.0
    %524 = vmatpush2.msra.mxu0 0.0
    %525 = vmatprep.subr.mxu0 0.0
    %526 = vmatpush2.msra.mxu0 0.0
    %527 = vmatprep.subr.mxu0 0.0
    %528 = vmatpush2.msra.mxu0 0.0
    %529 = vmatprep.subr.mxu0 0.0
    %530 = vmatpush2.msra.mxu0 0.0
    %531 = vmatprep.subr.mxu0 0.0
    %532 = vmatpush2.msra.mxu0 0.0
    %533 = vmatprep.subr.mxu0 0.0
    %534 = vmatpush2.msra.mxu0 0.0
    %535 = vmatprep.subr.mxu0 0.0
    %536 = vmatpush2.msra.mxu0 0.0
    %537 = vmatprep.mubr.f32.mxu0 0.0
    %538 = vmatmul.mubr.f32.gmra.mxu0 %v468
    %v539 = vpop.f32.mrf.mxu0
    %v540 = vadd.f32 0.0, %v539
    %v541 = vpop.f32.mrf.mxu0
    %542 = vmatprep.mubr.f32.mxu0 0.0
    %543 = vmatmul.mubr.f32.gmra.mxu0 %v471
    %v544 = vpop.f32.mrf.mxu0
    %v545 = vadd.f32 0.0, %v544
    %v546 = vpop.f32.mrf.mxu0
    %547 = vdwg.mxu0
    %548 = vrot.lane.b32.xlu0 %v141, 112
    %v549 = vpop.permute.xlu0 %548
    %550 = vrot.lane.b32.xlu0 %v146, 112
    %v551 = vpop.permute.xlu0 %550
    %552 = vrot.lane.b32.xlu0 %v141, 80
    %v553 = vpop.permute.xlu0 %552
    %554 = vrot.lane.b32.xlu0 %v146, 80
    %v555 = vpop.permute.xlu0 %554
    %v556 = vsel %vm56, %v549, 0
    %v558 = vsel %vm56, %v551, 0
    %v560 = vsel %vm56, %v553, 0
    %v562 = vsel %vm56, %v555, 0
    %564 = vmatprep.subr.mxu0 0.0
    %565 = vmatpush1.xpose.msra.mxu0 0.0
    %566 = vmatprep.subr.mxu0 0.0
    %567 = vmatpush1.xpose.msra.mxu0 0.0
    %568 = vmatprep.subr.mxu0 0.0
    %569 = vmatpush1.xpose.msra.mxu0 0.0
    %570 = vmatprep.subr.mxu0 0.0
    %571 = vmatpush1.xpose.msra.mxu0 0.0
    %572 = vmatprep.subr.mxu0 0.0
    %573 = vmatpush1.xpose.msra.mxu0 0.0
    %574 = vmatprep.subr.mxu0 0.0
    %575 = vmatpush1.xpose.msra.mxu0 0.0
    %576 = vmatprep.subr.mxu0 0.0
    %577 = vmatpush1.xpose.msra.mxu0 0.0
    %578 = vmatprep.subr.mxu0 0.0
    %579 = vmatpush1.xpose.msra.mxu0 0.0
    %580 = vmatprep.subr.mxu0 0.0
    %581 = vmatpush1.xpose.msra.mxu0 0.0
    %582 = vmatprep.subr.mxu0 0.0
    %583 = vmatpush1.xpose.msra.mxu0 0.0
    %584 = vmatprep.subr.mxu0 0.0
    %585 = vmatpush1.xpose.msra.mxu0 0.0
    %586 = vmatprep.subr.mxu0 0.0
    %587 = vmatpush1.xpose.msra.mxu0 0.0
    %588 = vmatprep.subr.mxu0 0.0
    %589 = vmatpush1.xpose.msra.mxu0 0.0
    %590 = vmatprep.subr.mxu0 0.0
    %591 = vmatpush1.xpose.msra.mxu0 0.0
    %592 = vmatprep.subr.mxu0 0.0
    %593 = vmatpush1.xpose.msra.mxu0 %v562
    %594 = vmatprep.subr.mxu0 0.0
    %595 = vmatpush1.xpose.msra.mxu0 %v560
    %596 = vmatprep.subr.mxu0 0.0
    %597 = vmatpush2.xpose.msra.mxu0 0.0
    %598 = vmatprep.subr.mxu0 0.0
    %599 = vmatpush2.xpose.msra.mxu0 0.0
    %600 = vmatprep.subr.mxu0 0.0
    %601 = vmatpush2.xpose.msra.mxu0 0.0
    %602 = vmatprep.subr.mxu0 0.0
    %603 = vmatpush2.xpose.msra.mxu0 0.0
    %604 = vmatprep.subr.mxu0 0.0
    %605 = vmatpush2.xpose.msra.mxu0 0.0
    %606 = vmatprep.subr.mxu0 0.0
    %607 = vmatpush2.xpose.msra.mxu0 0.0
    %608 = vmatprep.subr.mxu0 0.0
    %609 = vmatpush2.xpose.msra.mxu0 0.0
    %610 = vmatprep.subr.mxu0 0.0
    %611 = vmatpush2.xpose.msra.mxu0 0.0
    %612 = vmatprep.subr.mxu0 0.0
    %613 = vmatpush2.xpose.msra.mxu0 0.0
    %614 = vmatprep.subr.mxu0 0.0
    %615 = vmatpush2.xpose.msra.mxu0 0.0
    %616 = vmatprep.subr.mxu0 0.0
    %617 = vmatpush2.xpose.msra.mxu0 0.0
    %618 = vmatprep.subr.mxu0 0.0
    %619 = vmatpush2.xpose.msra.mxu0 0.0
    %620 = vmatprep.subr.mxu0 0.0
    %621 = vmatpush2.xpose.msra.mxu0 0.0
    %622 = vmatprep.subr.mxu0 0.0
    %623 = vmatpush2.xpose.msra.mxu0 0.0
    %624 = vmatprep.subr.mxu0 0.0
    %625 = vmatpush2.xpose.msra.mxu0 0.0
    %626 = vmatprep.subr.mxu0 0.0
    %627 = vmatpush2.xpose.msra.mxu0 0.0
    %628 = vmatprep.mubr.f32.mxu0 0.0
    %629 = vmatmul.mubr.f32.gmra.mxu0 %v556
    %v630 = vpop.f32.mrf.mxu0
    %v631 = vadd.f32 %v57, %v630
    %v632 = vpop.f32.mrf.mxu0
    %633 = vmatprep.mubr.f32.mxu0 0.0
    %634 = vmatmul.mubr.f32.gmra.mxu0 %v558
    %v635 = vpop.f32.mrf.mxu0
    %v636 = vadd.f32 %v62, %v635
    %v637 = vpop.f32.mrf.mxu0
    %638 = vdwg.mxu0
    %v639 = vsel %vm238, %v631, -inf
    %640 = vmax.xlane.f32.xlu0 %v639
    %v641 = vpop.xlane.xlu0 %640
    %v642 = vsel %vm238, %v636, -inf
    %643 = vmax.xlane.f32.xlu0 %v642
    %v644 = vpop.xlane.xlu0 %643
    %v645 = vsub.f32 %v631, %v641
    %v646 = vsub.f32 %v636, %v644
    %v647 = vmul.f32 %v645, 1.442695
    %v648 = vpow.pop %v647
    %v649 = vmul.f32 %v646, 1.442695
    %v650 = vpow.pop %v649
    %v651 = vsel %vm238, %v648, 0.0
    %652 = vadd.xlane.f32.xlu0 %v651
    %v653 = vpop.xlane.xlu0 %652
    %v654 = vsel %vm238, %v650, 0.0
    %655 = vadd.xlane.f32.xlu0 %v654
    %v656 = vpop.xlane.xlu0 %655
    %v657 = vrcp.pop %v653
    %v658 = vrcp.pop %v656
    %v659 = vmul.f32 %v648, %v657
    %v660 = vmul.f32 %v650, %v658
    %661 = vrot.lane.b32.xlu0 %v141, 48
    %v662 = vpop.permute.xlu0 %661
    %663 = vrot.lane.b32.xlu0 %v146, 48
    %v664 = vpop.permute.xlu0 %663
    %v668 = vsel %vm238, %v659, 0
    %v671 = vsel %vm238, %v660, 0
    %673 = vmatprep.subr.mxu0 0.0
    %674 = vmatpush1.msra.mxu0 0.0
    %675 = vmatprep.subr.mxu0 0.0
    %676 = vmatpush1.msra.mxu0 0.0
    %677 = vmatprep.subr.mxu0 0.0
    %678 = vmatpush1.msra.mxu0 0.0
    %679 = vmatprep.subr.mxu0 0.0
    %680 = vmatpush1.msra.mxu0 0.0
    %681 = vmatprep.subr.mxu0 0.0
    %682 = vmatpush1.msra.mxu0 0.0
    %683 = vmatprep.subr.mxu0 0.0
    %684 = vmatpush1.msra.mxu0 0.0
    %685 = vmatprep.subr.mxu0 0.0
    %686 = vmatpush1.msra.mxu0 0.0
    %687 = vmatprep.subr.mxu0 0.0
    %688 = vmatpush1.msra.mxu0 0.0
    %689 = vmatprep.subr.mxu0 0.0
    %690 = vmatpush1.msra.mxu0 0.0
    %691 = vmatprep.subr.mxu0 0.0
    %692 = vmatpush1.msra.mxu0 0.0
    %693 = vmatprep.subr.mxu0 0.0
    %694 = vmatpush1.msra.mxu0 0.0
    %695 = vmatprep.subr.mxu0 0.0
    %696 = vmatpush1.msra.mxu0 0.0
    %697 = vmatprep.subr.mxu0 0.0
    %698 = vmatpush1.msra.mxu0 0.0
    %699 = vmatprep.subr.mxu0 0.0
    %700 = vmatpush1.msra.mxu0 0.0
    %701 = vmatprep.subr.mxu0 0.0
    %702 = vmatpush1.msra.mxu0 %v664
    %703 = vmatprep.subr.mxu0 0.0
    %704 = vmatpush1.msra.mxu0 %v662
    %705 = vmatprep.subr.mxu0 0.0
    %706 = vmatpush2.msra.mxu0 0.0
    %707 = vmatprep.subr.mxu0 0.0
    %708 = vmatpush2.msra.mxu0 0.0
    %709 = vmatprep.subr.mxu0 0.0
    %710 = vmatpush2.msra.mxu0 0.0
    %711 = vmatprep.subr.mxu0 0.0
    %712 = vmatpush2.msra.mxu0 0.0
    %713 = vmatprep.subr.mxu0 0.0
    %714 = vmatpush2.msra.mxu0 0.0
    %715 = vmatprep.subr.mxu0 0.0
    %716 = vmatpush2.msra.mxu0 0.0
    %717 = vmatprep.subr.mxu0 0.0
    %718 = vmatpush2.msra.mxu0 0.0
    %719 = vmatprep.subr.mxu0 0.0
    %720 = vmatpush2.msra.mxu0 0.0
    %721 = vmatprep.subr.mxu0 0.0
    %722 = vmatpush2.msra.mxu0 0.0
    %723 = vmatprep.subr.mxu0 0.0
    %724 = vmatpush2.msra.mxu0 0.0
    %725 = vmatprep.subr.mxu0 0.0
    %726 = vmatpush2.msra.mxu0 0.0
    %727 = vmatprep.subr.mxu0 0.0
    %728 = vmatpush2.msra.mxu0 0.0
    %729 = vmatprep.subr.mxu0 0.0
    %730 = vmatpush2.msra.mxu0 0.0
    %731 = vmatprep.subr.mxu0 0.0
    %732 = vmatpush2.msra.mxu0 0.0
    %733 = vmatprep.subr.mxu0 0.0
    %734 = vmatpush2.msra.mxu0 0.0
    %735 = vmatprep.subr.mxu0 0.0
    %736 = vmatpush2.msra.mxu0 0.0
    %737 = vmatprep.mubr.f32.mxu0 0.0
    %738 = vmatmul.mubr.f32.gmra.mxu0 %v668
    %v739 = vpop.f32.mrf.mxu0
    %v740 = vadd.f32 0.0, %v739
    %v741 = vpop.f32.mrf.mxu0
    %742 = vmatprep.mubr.f32.mxu0 0.0
    %743 = vmatmul.mubr.f32.gmra.mxu0 %v671
    %v744 = vpop.f32.mrf.mxu0
    %v745 = vadd.f32 0.0, %v744
    %v746 = vpop.f32.mrf.mxu0
    %747 = vdwg.mxu0
    %748 = vrot.lane.b32.xlu0 %v141, 104
    %v749 = vpop.permute.xlu0 %748
    %750 = vrot.lane.b32.xlu0 %v146, 104
    %v751 = vpop.permute.xlu0 %750
    %752 = vrot.lane.b32.xlu0 %v141, 72
    %v753 = vpop.permute.xlu0 %752
    %754 = vrot.lane.b32.xlu0 %v146, 72
    %v755 = vpop.permute.xlu0 %754
    %v756 = vsel %vm56, %v749, 0
    %v758 = vsel %vm56, %v751, 0
    %v760 = vsel %vm56, %v753, 0
    %v762 = vsel %vm56, %v755, 0
    %764 = vmatprep.subr.mxu0 0.0
    %765 = vmatpush1.xpose.msra.mxu0 0.0
    %766 = vmatprep.subr.mxu0 0.0
    %767 = vmatpush1.xpose.msra.mxu0 0.0
    %768 = vmatprep.subr.mxu0 0.0
    %769 = vmatpush1.xpose.msra.mxu0 0.0
    %770 = vmatprep.subr.mxu0 0.0
    %771 = vmatpush1.xpose.msra.mxu0 0.0
    %772 = vmatprep.subr.mxu0 0.0
    %773 = vmatpush1.xpose.msra.mxu0 0.0
    %774 = vmatprep.subr.mxu0 0.0
    %775 = vmatpush1.xpose.msra.mxu0 0.0
    %776 = vmatprep.subr.mxu0 0.0
    %777 = vmatpush1.xpose.msra.mxu0 0.0
    %778 = vmatprep.subr.mxu0 0.0
    %779 = vmatpush1.xpose.msra.mxu0 0.0
    %780 = vmatprep.subr.mxu0 0.0
    %781 = vmatpush1.xpose.msra.mxu0 0.0
    %782 = vmatprep.subr.mxu0 0.0
    %783 = vmatpush1.xpose.msra.mxu0 0.0
    %784 = vmatprep.subr.mxu0 0.0
    %785 = vmatpush1.xpose.msra.mxu0 0.0
    %786 = vmatprep.subr.mxu0 0.0
    %787 = vmatpush1.xpose.msra.mxu0 0.0
    %788 = vmatprep.subr.mxu0 0.0
    %789 = vmatpush1.xpose.msra.mxu0 0.0
    %790 = vmatprep.subr.mxu0 0.0
    %791 = vmatpush1.xpose.msra.mxu0 0.0
    %792 = vmatprep.subr.mxu0 0.0
    %793 = vmatpush1.xpose.msra.mxu0 %v762
    %794 = vmatprep.subr.mxu0 0.0
    %795 = vmatpush1.xpose.msra.mxu0 %v760
    %796 = vmatprep.subr.mxu0 0.0
    %797 = vmatpush2.xpose.msra.mxu0 0.0
    %798 = vmatprep.subr.mxu0 0.0
    %799 = vmatpush2.xpose.msra.mxu0 0.0
    %800 = vmatprep.subr.mxu0 0.0
    %801 = vmatpush2.xpose.msra.mxu0 0.0
    %802 = vmatprep.subr.mxu0 0.0
    %803 = vmatpush2.xpose.msra.mxu0 0.0
    %804 = vmatprep.subr.mxu0 0.0
    %805 = vmatpush2.xpose.msra.mxu0 0.0
    %806 = vmatprep.subr.mxu0 0.0
    %807 = vmatpush2.xpose.msra.mxu0 0.0
    %808 = vmatprep.subr.mxu0 0.0
    %809 = vmatpush2.xpose.msra.mxu0 0.0
    %810 = vmatprep.subr.mxu0 0.0
    %811 = vmatpush2.xpose.msra.mxu0 0.0
    %812 = vmatprep.subr.mxu0 0.0
    %813 = vmatpush2.xpose.msra.mxu0 0.0
    %814 = vmatprep.subr.mxu0 0.0
    %815 = vmatpush2.xpose.msra.mxu0 0.0
    %816 = vmatprep.subr.mxu0 0.0
    %817 = vmatpush2.xpose.msra.mxu0 0.0
    %818 = vmatprep.subr.mxu0 0.0
    %819 = vmatpush2.xpose.msra.mxu0 0.0
    %820 = vmatprep.subr.mxu0 0.0
    %821 = vmatpush2.xpose.msra.mxu0 0.0
    %822 = vmatprep.subr.mxu0 0.0
    %823 = vmatpush2.xpose.msra.mxu0 0.0
    %824 = vmatprep.subr.mxu0 0.0
    %825 = vmatpush2.xpose.msra.mxu0 0.0
    %826 = vmatprep.subr.mxu0 0.0
    %827 = vmatpush2.xpose.msra.mxu0 0.0
    %828 = vmatprep.mubr.f32.mxu0 0.0
    %829 = vmatmul.mubr.f32.gmra.mxu0 %v756
    %v830 = vpop.f32.mrf.mxu0
    %v831 = vadd.f32 %v57, %v830
    %v832 = vpop.f32.mrf.mxu0
    %833 = vmatprep.mubr.f32.mxu0 0.0
    %834 = vmatmul.mubr.f32.gmra.mxu0 %v758
    %v835 = vpop.f32.mrf.mxu0
    %v836 = vadd.f32 %v62, %v835
    %v837 = vpop.f32.mrf.mxu0
    %838 = vdwg.mxu0
    %v839 = vsel %vm238, %v831, -inf
    %840 = vmax.xlane.f32.xlu0 %v839
    %v841 = vpop.xlane.xlu0 %840
    %v842 = vsel %vm238, %v836, -inf
    %843 = vmax.xlane.f32.xlu0 %v842
    %v844 = vpop.xlane.xlu0 %843
    %v845 = vsub.f32 %v831, %v841
    %v846 = vsub.f32 %v836, %v844
    %v847 = vmul.f32 %v845, 1.442695
    %v848 = vpow.pop %v847
    %v849 = vmul.f32 %v846, 1.442695
    %v850 = vpow.pop %v849
    %v851 = vsel %vm238, %v848, 0.0
    %852 = vadd.xlane.f32.xlu0 %v851
    %v853 = vpop.xlane.xlu0 %852
    %v854 = vsel %vm238, %v850, 0.0
    %855 = vadd.xlane.f32.xlu0 %v854
    %v856 = vpop.xlane.xlu0 %855
    %v857 = vrcp.pop %v853
    %v858 = vrcp.pop %v856
    %v859 = vmul.f32 %v848, %v857
    %v860 = vmul.f32 %v850, %v858
    %861 = vrot.lane.b32.xlu0 %v141, 40
    %v862 = vpop.permute.xlu0 %861
    %863 = vrot.lane.b32.xlu0 %v146, 40
    %v864 = vpop.permute.xlu0 %863
    %v868 = vsel %vm238, %v859, 0
    %v871 = vsel %vm238, %v860, 0
    %873 = vmatprep.subr.mxu0 0.0
    %874 = vmatpush1.msra.mxu0 0.0
    %875 = vmatprep.subr.mxu0 0.0
    %876 = vmatpush1.msra.mxu0 0.0
    %877 = vmatprep.subr.mxu0 0.0
    %878 = vmatpush1.msra.mxu0 0.0
    %879 = vmatprep.subr.mxu0 0.0
    %880 = vmatpush1.msra.mxu0 0.0
    %881 = vmatprep.subr.mxu0 0.0
    %882 = vmatpush1.msra.mxu0 0.0
    %883 = vmatprep.subr.mxu0 0.0
    %884 = vmatpush1.msra.mxu0 0.0
    %885 = vmatprep.subr.mxu0 0.0
    %886 = vmatpush1.msra.mxu0 0.0
    %887 = vmatprep.subr.mxu0 0.0
    %888 = vmatpush1.msra.mxu0 0.0
    %889 = vmatprep.subr.mxu0 0.0
    %890 = vmatpush1.msra.mxu0 0.0
    %891 = vmatprep.subr.mxu0 0.0
    %892 = vmatpush1.msra.mxu0 0.0
    %893 = vmatprep.subr.mxu0 0.0
    %894 = vmatpush1.msra.mxu0 0.0
    %895 = vmatprep.subr.mxu0 0.0
    %896 = vmatpush1.msra.mxu0 0.0
    %897 = vmatprep.subr.mxu0 0.0
    %898 = vmatpush1.msra.mxu0 0.0
    %899 = vmatprep.subr.mxu0 0.0
    %900 = vmatpush1.msra.mxu0 0.0
    %901 = vmatprep.subr.mxu0 0.0
    %902 = vmatpush1.msra.mxu0 %v864
    %903 = vmatprep.subr.mxu0 0.0
    %904 = vmatpush1.msra.mxu0 %v862
    %905 = vmatprep.subr.mxu0 0.0
    %906 = vmatpush2.msra.mxu0 0.0
    %907 = vmatprep.subr.mxu0 0.0
    %908 = vmatpush2.msra.mxu0 0.0
    %909 = vmatprep.subr.mxu0 0.0
    %910 = vmatpush2.msra.mxu0 0.0
    %911 = vmatprep.subr.mxu0 0.0
    %912 = vmatpush2.msra.mxu0 0.0
    %913 = vmatprep.subr.mxu0 0.0
    %914 = vmatpush2.msra.mxu0 0.0
    %915 = vmatprep.subr.mxu0 0.0
    %916 = vmatpush2.msra.mxu0 0.0
    %917 = vmatprep.subr.mxu0 0.0
    %918 = vmatpush2.msra.mxu0 0.0
    %919 = vmatprep.subr.mxu0 0.0
    %920 = vmatpush2.msra.mxu0 0.0
    %921 = vmatprep.subr.mxu0 0.0
    %922 = vmatpush2.msra.mxu0 0.0
    %923 = vmatprep.subr.mxu0 0.0
    %924 = vmatpush2.msra.mxu0 0.0
    %925 = vmatprep.subr.mxu0 0.0
    %926 = vmatpush2.msra.mxu0 0.0
    %927 = vmatprep.subr.mxu0 0.0
    %928 = vmatpush2.msra.mxu0 0.0
    %929 = vmatprep.subr.mxu0 0.0
    %930 = vmatpush2.msra.mxu0 0.0
    %931 = vmatprep.subr.mxu0 0.0
    %932 = vmatpush2.msra.mxu0 0.0
    %933 = vmatprep.subr.mxu0 0.0
    %934 = vmatpush2.msra.mxu0 0.0
    %935 = vmatprep.subr.mxu0 0.0
    %936 = vmatpush2.msra.mxu0 0.0
    %937 = vmatprep.mubr.f32.mxu0 0.0
    %938 = vmatmul.mubr.f32.gmra.mxu0 %v868
    %v939 = vpop.f32.mrf.mxu0
    %v940 = vadd.f32 0.0, %v939
    %v941 = vpop.f32.mrf.mxu0
    %942 = vmatprep.mubr.f32.mxu0 0.0
    %943 = vmatmul.mubr.f32.gmra.mxu0 %v871
    %v944 = vpop.f32.mrf.mxu0
    %v945 = vadd.f32 0.0, %v944
    %v946 = vpop.f32.mrf.mxu0
    %947 = vdwg.mxu0
    %950 = vrot.lane.b32.xlu0 %v540, 8
    %v951 = vpop.permute.xlu0 %950
    %952 = vrot.lane.b32.xlu0 %v545, 8
    %v953 = vpop.permute.xlu0 %952
    %958 = vrot.lane.b32.xlu0 %v740, 16
    %v959 = vpop.permute.xlu0 %958
    %960 = vrot.lane.b32.xlu0 %v745, 16
    %v961 = vpop.permute.xlu0 %960
    %966 = vrot.lane.b32.xlu0 %v940, 24
    %v967 = vpop.permute.xlu0 %966
    %968 = vrot.lane.b32.xlu0 %v945, 24
    %v969 = vpop.permute.xlu0 %968
    %v972 = vsel %vm56, %v340, %v951
    %v973 = vsel %vm56, %v345, %v953
    %v974 = vsel %vm238, %v972, %v959
    %v975 = vsel %vm238, %v973, %v961
    %vm976 = vcmask 195584
    %v977 = vsel %vm976, %v974, %v967
    %v978 = vsel %vm976, %v975, %v969
    %v979 = vlaneseq
    %v980 = vshrl.u32 %v979, 7
    %v981 = vsub.s32 2, %v980
    %v982 = vrot.slane %v51, %v981
    %987 = vrot.lane.b32.xlu0 %v23, 32
    %v988 = vpop.permute.xlu0 %987
    %989 = vrot.lane.b32.xlu0 %v26, 32
    %v990 = vpop.permute.xlu0 %989
    %991 = vrot.lane.b32.xlu0 %v29, 32
    %v992 = vpop.permute.xlu0 %991
    %993 = vrot.lane.b32.xlu0 %v32, 32
    %v994 = vpop.permute.xlu0 %993
    %v1000 = vsel %vm67, %v977, 0
    %v1003 = vsel %vm67, %v978, 0
    %1005 = vmatprep.subr.mxu0 0.0
    %1006 = vmatpush1.msra.mxu0 0.0
    %1007 = vmatprep.subr.mxu0 0.0
    %1008 = vmatpush1.msra.mxu0 0.0
    %1009 = vmatprep.subr.mxu0 0.0
    %1010 = vmatpush1.msra.mxu0 0.0
    %1011 = vmatprep.subr.mxu0 0.0
    %1012 = vmatpush1.msra.mxu0 0.0
    %1013 = vmatprep.subr.mxu0 0.0
    %1014 = vmatpush1.msra.mxu0 0.0
    %1015 = vmatprep.subr.mxu0 0.0
    %1016 = vmatpush1.msra.mxu0 0.0
    %1017 = vmatprep.subr.mxu0 0.0
    %1018 = vmatpush1.msra.mxu0 0.0
    %1019 = vmatprep.subr.mxu0 0.0
    %1020 = vmatpush1.msra.mxu0 0.0
    %1021 = vmatprep.subr.mxu0 0.0
    %1022 = vmatpush1.msra.mxu0 0.0
    %1023 = vmatprep.subr.mxu0 0.0
    %1024 = vmatpush1.msra.mxu0 0.0
    %1025 = vmatprep.subr.mxu0 0.0
    %1026 = vmatpush1.msra.mxu0 0.0
    %1027 = vmatprep.subr.mxu0 0.0
    %1028 = vmatpush1.msra.mxu0 0.0
    %1029 = vmatprep.subr.mxu0 0.0
    %1030 = vmatpush1.msra.mxu0 %v994
    %1031 = vmatprep.subr.mxu0 0.0
    %1032 = vmatpush1.msra.mxu0 %v992
    %1033 = vmatprep.subr.mxu0 0.0
    %1034 = vmatpush1.msra.mxu0 %v990
    %1035 = vmatprep.subr.mxu0 0.0
    %1036 = vmatpush1.msra.mxu0 %v988
    %1037 = vmatprep.subr.mxu0 0.0
    %1038 = vmatpush2.msra.mxu0 0.0
    %1039 = vmatprep.subr.mxu0 0.0
    %1040 = vmatpush2.msra.mxu0 0.0
    %1041 = vmatprep.subr.mxu0 0.0
    %1042 = vmatpush2.msra.mxu0 0.0
    %1043 = vmatprep.subr.mxu0 0.0
    %1044 = vmatpush2.msra.mxu0 0.0
    %1045 = vmatprep.subr.mxu0 0.0
    %1046 = vmatpush2.msra.mxu0 0.0
    %1047 = vmatprep.subr.mxu0 0.0
    %1048 = vmatpush2.msra.mxu0 0.0
    %1049 = vmatprep.subr.mxu0 0.0
    %1050 = vmatpush2.msra.mxu0 0.0
    %1051 = vmatprep.subr.mxu0 0.0
    %1052 = vmatpush2.msra.mxu0 0.0
    %1053 = vmatprep.subr.mxu0 0.0
    %1054 = vmatpush2.msra.mxu0 0.0
    %1055 = vmatprep.subr.mxu0 0.0
    %1056 = vmatpush2.msra.mxu0 0.0
    %1057 = vmatprep.subr.mxu0 0.0
    %1058 = vmatpush2.msra.mxu0 0.0
    %1059 = vmatprep.subr.mxu0 0.0
    %1060 = vmatpush2.msra.mxu0 0.0
    %1061 = vmatprep.subr.mxu0 0.0
    %1062 = vmatpush2.msra.mxu0 0.0
    %1063 = vmatprep.subr.mxu0 0.0
    %1064 = vmatpush2.msra.mxu0 0.0
    %1065 = vmatprep.subr.mxu0 0.0
    %1066 = vmatpush2.msra.mxu0 0.0
    %1067 = vmatprep.subr.mxu0 0.0
    %1068 = vmatpush2.msra.mxu0 0.0
    %1069 = vmatprep.mubr.f32.mxu0 0.0
    %1070 = vmatmul.mubr.f32.gmra.mxu0 %v1000
    %v1071 = vpop.f32.mrf.mxu0
    %v1072 = vadd.f32 %v982, %v1071
    %v1073 = vpop.f32.mrf.mxu0
    %1074 = vmatprep.mubr.f32.mxu0 0.0
    %1075 = vmatmul.mubr.f32.gmra.mxu0 %v1003
    %v1076 = vpop.f32.mrf.mxu0
    %v1077 = vadd.f32 %v982, %v1076
    %v1078 = vpop.f32.mrf.mxu0
    %1079 = vdwg.mxu0
    %v1080 = vadd.f32 %v1072, %v21
    %v1081 = vadd.f32 %v1077, %v22
    %v1082 = vsel %vm67, %v1080, 0.0
    %1083 = vadd.xlane.f32.xlu0 %v1082
    %v1084 = vpop.xlane.xlu0 %1083
    %v1085 = vsel %vm67, %v1081, 0.0
    %1086 = vadd.xlane.f32.xlu0 %v1085
    %v1087 = vpop.xlane.xlu0 %1086
    %v1088 = vrcp.pop 32.0
    %v1089 = vmul.f32 %v1084, %v1088
    %v1090 = vmul.f32 %v1087, %v1088
    %v1091 = vsub.f32 %v1080, %v1089
    %v1092 = vsub.f32 %v1081, %v1090
    %v1093 = vmul.f32 %v1091, %v1091
    %v1094 = vmul.f32 %v1092, %v1092
    %v1095 = vsel %vm67, %v1093, 0.0
    %1096 = vadd.xlane.f32.xlu0 %v1095
    %v1097 = vpop.xlane.xlu0 %1096
    %v1098 = vsel %vm67, %v1094, 0.0
    %1099 = vadd.xlane.f32.xlu0 %v1098
    %v1100 = vpop.xlane.xlu0 %1099
    %v1101 = vmul.f32 %v1097, %v1088
    %v1102 = vmul.f32 %v1100, %v1088
    %v1103 = vadd.f32 %v1101, 1e-05
    %v1104 = vadd.f32 %v1102, 1e-05
    %v1105 = vrsqrt.pop %v1103
    %v1106 = vrsqrt.pop %v1104
    %v1107 = vmul.f32 %v1091, %v1105
    %v1108 = vmul.f32 %v1092, %v1106
    %v1109 = vlaneseq
    %v1110 = vshrl.u32 %v1109, 7
    %v1111 = vsub.s32 6, %v1110
    %v1112 = vrot.slane %v51, %v1111
    %v1113 = vmul.f32 %v1107, %v1112
    %v1114 = vmul.f32 %v1108, %v1112
    %v1115 = vlaneseq
    %v1116 = vshrl.u32 %v1115, 7
    %v1117 = vsub.s32 1, %v1116
    %v1118 = vrot.slane %v52, %v1117
    %v1119 = vadd.f32 %v1113, %v1118
    %v1120 = vadd.f32 %v1114, %v1118
    %v1121 = vlaneseq
    %v1122 = vshrl.u32 %v1121, 7
    %v1123 = vsub.s32 1, %v1122
    %v1124 = vrot.slane %v51, %v1123
    %v1126 = vsel %vm67, %v1119, 0
    %v1129 = vsel %vm67, %v1120, 0
    %1131 = vmatprep.subr.mxu0 0.0
    %1132 = vmatpush1.msra.mxu0 0.0
    %1133 = vmatprep.subr.mxu0 0.0
    %1134 = vmatpush1.msra.mxu0 0.0
    %1135 = vmatprep.subr.mxu0 0.0
    %1136 = vmatpush1.msra.mxu0 0.0
    %1137 = vmatprep.subr.mxu0 0.0
    %1138 = vmatpush1.msra.mxu0 0.0
    %1139 = vmatprep.subr.mxu0 0.0
    %1140 = vmatpush1.msra.mxu0 0.0
    %1141 = vmatprep.subr.mxu0 0.0
    %1142 = vmatpush1.msra.mxu0 0.0
    %1143 = vmatprep.subr.mxu0 0.0
    %1144 = vmatpush1.msra.mxu0 0.0
    %1145 = vmatprep.subr.mxu0 0.0
    %1146 = vmatpush1.msra.mxu0 0.0
    %1147 = vmatprep.subr.mxu0 0.0
    %1148 = vmatpush1.msra.mxu0 0.0
    %1149 = vmatprep.subr.mxu0 0.0
    %1150 = vmatpush1.msra.mxu0 0.0
    %1151 = vmatprep.subr.mxu0 0.0
    %1152 = vmatpush1.msra.mxu0 0.0
    %1153 = vmatprep.subr.mxu0 0.0
    %1154 = vmatpush1.msra.mxu0 0.0
    %1155 = vmatprep.subr.mxu0 0.0
    %1156 = vmatpush1.msra.mxu0 %v33
    %1157 = vmatprep.subr.mxu0 0.0
    %1158 = vmatpush1.msra.mxu0 %v30
    %1159 = vmatprep.subr.mxu0 0.0
    %1160 = vmatpush1.msra.mxu0 %v27
    %1161 = vmatprep.subr.mxu0 0.0
    %1162 = vmatpush1.msra.mxu0 %v24
    %1163 = vmatprep.subr.mxu0 0.0
    %1164 = vmatpush2.msra.mxu0 0.0
    %1165 = vmatprep.subr.mxu0 0.0
    %1166 = vmatpush2.msra.mxu0 0.0
    %1167 = vmatprep.subr.mxu0 0.0
    %1168 = vmatpush2.msra.mxu0 0.0
    %1169 = vmatprep.subr.mxu0 0.0
    %1170 = vmatpush2.msra.mxu0 0.0
    %1171 = vmatprep.subr.mxu0 0.0
    %1172 = vmatpush2.msra.mxu0 0.0
    %1173 = vmatprep.subr.mxu0 0.0
    %1174 = vmatpush2.msra.mxu0 0.0
    %1175 = vmatprep.subr.mxu0 0.0
    %1176 = vmatpush2.msra.mxu0 0.0
    %1177 = vmatprep.subr.mxu0 0.0
    %1178 = vmatpush2.msra.mxu0 0.0
    %1179 = vmatprep.subr.mxu0 0.0
    %1180 = vmatpush2.msra.mxu0 0.0
    %1181 = vmatprep.subr.mxu0 0.0
    %1182 = vmatpush2.msra.mxu0 0.0
    %1183 = vmatprep.subr.mxu0 0.0
    %1184 = vmatpush2.msra.mxu0 0.0
    %1185 = vmatprep.subr.mxu0 0.0
    %1186 = vmatpush2.msra.mxu0 0.0
    %1187 = vmatprep.subr.mxu0 0.0
    %1188 = vmatpush2.msra.mxu0 0.0
    %1189 = vmatprep.subr.mxu0 0.0
    %1190 = vmatpush2.msra.mxu0 0.0
    %1191 = vmatprep.subr.mxu0 0.0
    %1192 = vmatpush2.msra.mxu0 0.0
    %1193 = vmatprep.subr.mxu0 0.0
    %1194 = vmatpush2.msra.mxu0 0.0
    %1195 = vmatprep.mubr.f32.mxu0 0.0
    %1196 = vmatmul.mubr.f32.gmra.mxu0 %v1126
    %v1197 = vpop.f32.mrf.mxu0
    %v1198 = vadd.f32 %v1124, %v1197
    %v1199 = vpop.f32.mrf.mxu0
    %1200 = vmatprep.mubr.f32.mxu0 0.0
    %1201 = vmatmul.mubr.f32.gmra.mxu0 %v1129
    %v1202 = vpop.f32.mrf.mxu0
    %v1203 = vadd.f32 %v1124, %v1202
    %v1204 = vpop.f32.mrf.mxu0
    %1205 = vdwg.mxu0
    %1208 = vrot.lane.b32.xlu0 %v1198, 96
    %v1209 = vpop.permute.xlu0 %1208
    %1210 = vrot.lane.b32.xlu0 %v1203, 96
    %v1211 = vpop.permute.xlu0 %1210
    %v1212 = vsel %vm56, %v1198, 0
    %v1214 = vsel %vm56, %v1203, 0
    %v1216 = vsel %vm56, %v1209, 0
    %v1218 = vsel %vm56, %v1211, 0
    %1220 = vmatprep.subr.mxu0 0.0
    %1221 = vmatpush1.xpose.msra.mxu0 0.0
    %1222 = vmatprep.subr.mxu0 0.0
    %1223 = vmatpush1.xpose.msra.mxu0 0.0
    %1224 = vmatprep.subr.mxu0 0.0
    %1225 = vmatpush1.xpose.msra.mxu0 0.0
    %1226 = vmatprep.subr.mxu0 0.0
    %1227 = vmatpush1.xpose.msra.mxu0 0.0
    %1228 = vmatprep.subr.mxu0 0.0
    %1229 = vmatpush1.xpose.msra.mxu0 0.0
    %1230 = vmatprep.subr.mxu0 0.0
    %1231 = vmatpush1.xpose.msra.mxu0 0.0
    %1232 = vmatprep.subr.mxu0 0.0
    %1233 = vmatpush1.xpose.msra.mxu0 0.0
    %1234 = vmatprep.subr.mxu0 0.0
    %1235 = vmatpush1.xpose.msra.mxu0 0.0
    %1236 = vmatprep.subr.mxu0 0.0
    %1237 = vmatpush1.xpose.msra.mxu0 0.0
    %1238 = vmatprep.subr.mxu0 0.0
    %1239 = vmatpush1.xpose.msra.mxu0 0.0
    %1240 = vmatprep.subr.mxu0 0.0
    %1241 = vmatpush1.xpose.msra.mxu0 0.0
    %1242 = vmatprep.subr.mxu0 0.0
    %1243 = vmatpush1.xpose.msra.mxu0 0.0
    %1244 = vmatprep.subr.mxu0 0.0
    %1245 = vmatpush1.xpose.msra.mxu0 0.0
    %1246 = vmatprep.subr.mxu0 0.0
    %1247 = vmatpush1.xpose.msra.mxu0 0.0
    %1248 = vmatprep.subr.mxu0 0.0
    %1249 = vmatpush1.xpose.msra.mxu0 %v1218
    %1250 = vmatprep.subr.mxu0 0.0
    %1251 = vmatpush1.xpose.msra.mxu0 %v1216
    %1252 = vmatprep.subr.mxu0 0.0
    %1253 = vmatpush2.xpose.msra.mxu0 0.0
    %1254 = vmatprep.subr.mxu0 0.0
    %1255 = vmatpush2.xpose.msra.mxu0 0.0
    %1256 = vmatprep.subr.mxu0 0.0
    %1257 = vmatpush2.xpose.msra.mxu0 0.0
    %1258 = vmatprep.subr.mxu0 0.0
    %1259 = vmatpush2.xpose.msra.mxu0 0.0
    %1260 = vmatprep.subr.mxu0 0.0
    %1261 = vmatpush2.xpose.msra.mxu0 0.0
    %1262 = vmatprep.subr.mxu0 0.0
    %1263 = vmatpush2.xpose.msra.mxu0 0.0
    %1264 = vmatprep.subr.mxu0 0.0
    %1265 = vmatpush2.xpose.msra.mxu0 0.0
    %1266 = vmatprep.subr.mxu0 0.0
    %1267 = vmatpush2.xpose.msra.mxu0 0.0
    %1268 = vmatprep.subr.mxu0 0.0
    %1269 = vmatpush2.xpose.msra.mxu0 0.0
    %1270 = vmatprep.subr.mxu0 0.0
    %1271 = vmatpush2.xpose.msra.mxu0 0.0
    %1272 = vmatprep.subr.mxu0 0.0
    %1273 = vmatpush2.xpose.msra.mxu0 0.0
    %1274 = vmatprep.subr.mxu0 0.0
    %1275 = vmatpush2.xpose.msra.mxu0 0.0
    %1276 = vmatprep.subr.mxu0 0.0
    %1277 = vmatpush2.xpose.msra.mxu0 0.0
    %1278 = vmatprep.subr.mxu0 0.0
    %1279 = vmatpush2.xpose.msra.mxu0 0.0
    %1280 = vmatprep.subr.mxu0 0.0
    %1281 = vmatpush2.xpose.msra.mxu0 0.0
    %1282 = vmatprep.subr.mxu0 0.0
    %1283 = vmatpush2.xpose.msra.mxu0 0.0
    %1284 = vmatprep.mubr.f32.mxu0 0.0
    %1285 = vmatmul.mubr.f32.gmra.mxu0 %v1212
    %v1286 = vpop.f32.mrf.mxu0
    %v1287 = vadd.f32 %v57, %v1286
    %v1288 = vpop.f32.mrf.mxu0
    %1289 = vmatprep.mubr.f32.mxu0 0.0
    %1290 = vmatmul.mubr.f32.gmra.mxu0 %v1214
    %v1291 = vpop.f32.mrf.mxu0
    %v1292 = vadd.f32 %v62, %v1291
    %v1293 = vpop.f32.mrf.mxu0
    %1294 = vdwg.mxu0
    %v1295 = vsel %vm238, %v1287, -inf
    %1296 = vmax.xlane.f32.xlu0 %v1295
    %v1297 = vpop.xlane.xlu0 %1296
    %v1298 = vsel %vm238, %v1292, -inf
    %1299 = vmax.xlane.f32.xlu0 %v1298
    %v1300 = vpop.xlane.xlu0 %1299
    %v1301 = vsub.f32 %v1287, %v1297
    %v1302 = vsub.f32 %v1292, %v1300
    %v1303 = vmul.f32 %v1301, 1.442695
    %v1304 = vpow.pop %v1303
    %v1305 = vmul.f32 %v1302, 1.442695
    %v1306 = vpow.pop %v1305
    %v1307 = vsel %vm238, %v1304, 0.0
    %1308 = vadd.xlane.f32.xlu0 %v1307
    %v1309 = vpop.xlane.xlu0 %1308
    %v1310 = vsel %vm238, %v1306, 0.0
    %1311 = vadd.xlane.f32.xlu0 %v1310
    %v1312 = vpop.xlane.xlu0 %1311
    %v1313 = vrcp.pop %v1309
    %v1314 = vrcp.pop %v1312
    %v1315 = vmul.f32 %v1304, %v1313
    %v1316 = vmul.f32 %v1306, %v1314
    %1317 = vrot.lane.b32.xlu0 %v1198, 64
    %v1318 = vpop.permute.xlu0 %1317
    %1319 = vrot.lane.b32.xlu0 %v1203, 64
    %v1320 = vpop.permute.xlu0 %1319
    %v1324 = vsel %vm238, %v1315, 0
    %v1327 = vsel %vm238, %v1316, 0
    %1329 = vmatprep.subr.mxu0 0.0
    %1330 = vmatpush1.msra.mxu0 0.0
    %1331 = vmatprep.subr.mxu0 0.0
    %1332 = vmatpush1.msra.mxu0 0.0
    %1333 = vmatprep.subr.mxu0 0.0
    %1334 = vmatpush1.msra.mxu0 0.0
    %1335 = vmatprep.subr.mxu0 0.0
    %1336 = vmatpush1.msra.mxu0 0.0
    %1337 = vmatprep.subr.mxu0 0.0
    %1338 = vmatpush1.msra.mxu0 0.0
    %1339 = vmatprep.subr.mxu0 0.0
    %1340 = vmatpush1.msra.mxu0 0.0
    %1341 = vmatprep.subr.mxu0 0.0
    %1342 = vmatpush1.msra.mxu0 0.0
    %1343 = vmatprep.subr.mxu0 0.0
    %1344 = vmatpush1.msra.mxu0 0.0
    %1345 = vmatprep.subr.mxu0 0.0
    %1346 = vmatpush1.msra.mxu0 0.0
    %1347 = vmatprep.subr.mxu0 0.0
    %1348 = vmatpush1.msra.mxu0 0.0
    %1349 = vmatprep.subr.mxu0 0.0
    %1350 = vmatpush1.msra.mxu0 0.0
    %1351 = vmatprep.subr.mxu0 0.0
    %1352 = vmatpush1.msra.mxu0 0.0
    %1353 = vmatprep.subr.mxu0 0.0
    %1354 = vmatpush1.msra.mxu0 0.0
    %1355 = vmatprep.subr.mxu0 0.0
    %1356 = vmatpush1.msra.mxu0 0.0
    %1357 = vmatprep.subr.mxu0 0.0
    %1358 = vmatpush1.msra.mxu0 %v1320
    %1359 = vmatprep.subr.mxu0 0.0
    %1360 = vmatpush1.msra.mxu0 %v1318
    %1361 = vmatprep.subr.mxu0 0.0
    %1362 = vmatpush2.msra.mxu0 0.0
    %1363 = vmatprep.subr.mxu0 0.0
    %1364 = vmatpush2.msra.mxu0 0.0
    %1365 = vmatprep.subr.mxu0 0.0
    %1366 = vmatpush2.msra.mxu0 0.0
    %1367 = vmatprep.subr.mxu0 0.0
    %1368 = vmatpush2.msra.mxu0 0.0
    %1369 = vmatprep.subr.mxu0 0.0
    %1370 = vmatpush2.msra.mxu0 0.0
    %1371 = vmatprep.subr.mxu0 0.0
    %1372 = vmatpush2.msra.mxu0 0.0
    %1373 = vmatprep.subr.mxu0 0.0
    %1374 = vmatpush2.msra.mxu0 0.0
    %1375 = vmatprep.subr.mxu0 0.0
    %1376 = vmatpush2.msra.mxu0 0.0
    %1377 = vmatprep.subr.mxu0 0.0
    %1378 = vmatpush2.msra.mxu0 0.0
    %1379 = vmatprep.subr.mxu0 0.0
    %1380 = vmatpush2.msra.mxu0 0.0
    %1381 = vmatprep.subr.mxu0 0.0
    %1382 = vmatpush2.msra.mxu0 0.0
    %1383 = vmatprep.subr.mxu0 0.0
    %1384 = vmatpush2.msra.mxu0 0.0
    %1385 = vmatprep.subr.mxu0 0.0
    %1386 = vmatpush2.msra.mxu0 0.0
    %1387 = vmatprep.subr.mxu0 0.0
    %1388 = vmatpush2.msra.mxu0 0.0
    %1389 = vmatprep.subr.mxu0 0.0
    %1390 = vmatpush2.msra.mxu0 0.0
    %1391 = vmatprep.subr.mxu0 0.0
    %1392 = vmatpush2.msra.mxu0 0.0
    %1393 = vmatprep.mubr.f32.mxu0 0.0
    %1394 = vmatmul.mubr.f32.gmra.mxu0 %v1324
    %v1395 = vpop.f32.mrf.mxu0
    %v1396 = vadd.f32 0.0, %v1395
    %v1397 = vpop.f32.mrf.mxu0
    %1398 = vmatprep.mubr.f32.mxu0 0.0
    %1399 = vmatmul.mubr.f32.gmra.mxu0 %v1327
    %v1400 = vpop.f32.mrf.mxu0
    %v1401 = vadd.f32 0.0, %v1400
    %v1402 = vpop.f32.mrf.mxu0
    %1403 = vdwg.mxu0
    %1404 = vrot.lane.b32.xlu0 %v1198, 120
    %v1405 = vpop.permute.xlu0 %1404
    %1406 = vrot.lane.b32.xlu0 %v1203, 120
    %v1407 = vpop.permute.xlu0 %1406
    %1408 = vrot.lane.b32.xlu0 %v1198, 88
    %v1409 = vpop.permute.xlu0 %1408
    %1410 = vrot.lane.b32.xlu0 %v1203, 88
    %v1411 = vpop.permute.xlu0 %1410
    %v1412 = vsel %vm56, %v1405, 0
    %v1414 = vsel %vm56, %v1407, 0
    %v1416 = vsel %vm56, %v1409, 0
    %v1418 = vsel %vm56, %v1411, 0
    %1420 = vmatprep.subr.mxu0 0.0
    %1421 = vmatpush1.xpose.msra.mxu0 0.0
    %1422 = vmatprep.subr.mxu0 0.0
    %1423 = vmatpush1.xpose.msra.mxu0 0.0
    %1424 = vmatprep.subr.mxu0 0.0
    %1425 = vmatpush1.xpose.msra.mxu0 0.0
    %1426 = vmatprep.subr.mxu0 0.0
    %1427 = vmatpush1.xpose.msra.mxu0 0.0
    %1428 = vmatprep.subr.mxu0 0.0
    %1429 = vmatpush1.xpose.msra.mxu0 0.0
    %1430 = vmatprep.subr.mxu0 0.0
    %1431 = vmatpush1.xpose.msra.mxu0 0.0
    %1432 = vmatprep.subr.mxu0 0.0
    %1433 = vmatpush1.xpose.msra.mxu0 0.0
    %1434 = vmatprep.subr.mxu0 0.0
    %1435 = vmatpush1.xpose.msra.mxu0 0.0
    %1436 = vmatprep.subr.mxu0 0.0
    %1437 = vmatpush1.xpose.msra.mxu0 0.0
    %1438 = vmatprep.subr.mxu0 0.0
    %1439 = vmatpush1.xpose.msra.mxu0 0.0
    %1440 = vmatprep.subr.mxu0 0.0
    %1441 = vmatpush1.xpose.msra.mxu0 0.0
    %1442 = vmatprep.subr.mxu0 0.0
    %1443 = vmatpush1.xpose.msra.mxu0 0.0
    %1444 = vmatprep.subr.mxu0 0.0
    %1445 = vmatpush1.xpose.msra.mxu0 0.0
    %1446 = vmatprep.subr.mxu0 0.0
    %1447 = vmatpush1.xpose.msra.mxu0 0.0
    %1448 = vmatprep.subr.mxu0 0.0
    %1449 = vmatpush1.xpose.msra.mxu0 %v1418
    %1450 = vmatprep.subr.mxu0 0.0
    %1451 = vmatpush1.xpose.msra.mxu0 %v1416
    %1452 = vmatprep.subr.mxu0 0.0
    %1453 = vmatpush2.xpose.msra.mxu0 0.0
    %1454 = vmatprep.subr.mxu0 0.0
    %1455 = vmatpush2.xpose.msra.mxu0 0.0
    %1456 = vmatprep.subr.mxu0 0.0
    %1457 = vmatpush2.xpose.msra.mxu0 0.0
    %1458 = vmatprep.subr.mxu0 0.0
    %1459 = vmatpush2.xpose.msra.mxu0 0.0
    %1460 = vmatprep.subr.mxu0 0.0
    %1461 = vmatpush2.xpose.msra.mxu0 0.0
    %1462 = vmatprep.subr.mxu0 0.0
    %1463 = vmatpush2.xpose.msra.mxu0 0.0
    %1464 = vmatprep.subr.mxu0 0.0
    %1465 = vmatpush2.xpose.msra.mxu0 0.0
    %1466 = vmatprep.subr.mxu0 0.0
    %1467 = vmatpush2.xpose.msra.mxu0 0.0
    %1468 = vmatprep.subr.mxu0 0.0
    %1469 = vmatpush2.xpose.msra.mxu0 0.0
    %1470 = vmatprep.subr.mxu0 0.0
    %1471 = vmatpush2.xpose.msra.mxu0 0.0
    %1472 = vmatprep.subr.mxu0 0.0
    %1473 = vmatpush2.xpose.msra.mxu0 0.0
    %1474 = vmatprep.subr.mxu0 0.0
    %1475 = vmatpush2.xpose.msra.mxu0 0.0
    %1476 = vmatprep.subr.mxu0 0.0
    %1477 = vmatpush2.xpose.msra.mxu0 0.0
    %1478 = vmatprep.subr.mxu0 0.0
    %1479 = vmatpush2.xpose.msra.mxu0 0.0
    %1480 = vmatprep.subr.mxu0 0.0
    %1481 = vmatpush2.xpose.msra.mxu0 0.0
    %1482 = vmatprep.subr.mxu0 0.0
    %1483 = vmatpush2.xpose.msra.mxu0 0.0
    %1484 = vmatprep.mubr.f32.mxu0 0.0
    %1485 = vmatmul.mubr.f32.gmra.mxu0 %v1412
    %v1486 = vpop.f32.mrf.mxu0
    %v1487 = vadd.f32 %v57, %v1486
    %v1488 = vpop.f32.mrf.mxu0
    %1489 = vmatprep.mubr.f32.mxu0 0.0
    %1490 = vmatmul.mubr.f32.gmra.mxu0 %v1414
    %v1491 = vpop.f32.mrf.mxu0
    %v1492 = vadd.f32 %v62, %v1491
    %v1493 = vpop.f32.mrf.mxu0
    %1494 = vdwg.mxu0
    %v1495 = vsel %vm238, %v1487, -inf
    %1496 = vmax.xlane.f32.xlu0 %v1495
    %v1497 = vpop.xlane.xlu0 %1496
    %v1498 = vsel %vm238, %v1492, -inf
    %1499 = vmax.xlane.f32.xlu0 %v1498
    %v1500 = vpop.xlane.xlu0 %1499
    %v1501 = vsub.f32 %v1487, %v1497
    %v1502 = vsub.f32 %v1492, %v1500
    %v1503 = vmul.f32 %v1501, 1.442695
    %v1504 = vpow.pop %v1503
    %v1505 = vmul.f32 %v1502, 1.442695
    %v1506 = vpow.pop %v1505
    %v1507 = vsel %vm238, %v1504, 0.0
    %1508 = vadd.xlane.f32.xlu0 %v1507
    %v1509 = vpop.xlane.xlu0 %1508
    %v1510 = vsel %vm238, %v1506, 0.0
    %1511 = vadd.xlane.f32.xlu0 %v1510
    %v1512 = vpop.xlane.xlu0 %1511
    %v1513 = vrcp.pop %v1509
    %v1514 = vrcp.pop %v1512
    %v1515 = vmul.f32 %v1504, %v1513
    %v1516 = vmul.f32 %v1506, %v1514
    %1517 = vrot.lane.b32.xlu0 %v1198, 56
    %v1518 = vpop.permute.xlu0 %1517
    %1519 = vrot.lane.b32.xlu0 %v1203, 56
    %v1520 = vpop.permute.xlu0 %1519
    %v1524 = vsel %vm238, %v1515, 0
    %v1527 = vsel %vm238, %v1516, 0
    %1529 = vmatprep.subr.mxu0 0.0
    %1530 = vmatpush1.msra.mxu0 0.0
    %1531 = vmatprep.subr.mxu0 0.0
    %1532 = vmatpush1.msra.mxu0 0.0
    %1533 = vmatprep.subr.mxu0 0.0
    %1534 = vmatpush1.msra.mxu0 0.0
    %1535 = vmatprep.subr.mxu0 0.0
    %1536 = vmatpush1.msra.mxu0 0.0
    %1537 = vmatprep.subr.mxu0 0.0
    %1538 = vmatpush1.msra.mxu0 0.0
    %1539 = vmatprep.subr.mxu0 0.0
    %1540 = vmatpush1.msra.mxu0 0.0
    %1541 = vmatprep.subr.mxu0 0.0
    %1542 = vmatpush1.msra.mxu0 0.0
    %1543 = vmatprep.subr.mxu0 0.0
    %1544 = vmatpush1.msra.mxu0 0.0
    %1545 = vmatprep.subr.mxu0 0.0
    %1546 = vmatpush1.msra.mxu0 0.0
    %1547 = vmatprep.subr.mxu0 0.0
    %1548 = vmatpush1.msra.mxu0 0.0
    %1549 = vmatprep.subr.mxu0 0.0
    %1550 = vmatpush1.msra.mxu0 0.0
    %1551 = vmatprep.subr.mxu0 0.0
    %1552 = vmatpush1.msra.mxu0 0.0
    %1553 = vmatprep.subr.mxu0 0.0
    %1554 = vmatpush1.msra.mxu0 0.0
    %1555 = vmatprep.subr.mxu0 0.0
    %1556 = vmatpush1.msra.mxu0 0.0
    %1557 = vmatprep.subr.mxu0 0.0
    %1558 = vmatpush1.msra.mxu0 %v1520
    %1559 = vmatprep.subr.mxu0 0.0
    %1560 = vmatpush1.msra.mxu0 %v1518
    %1561 = vmatprep.subr.mxu0 0.0
    %1562 = vmatpush2.msra.mxu0 0.0
    %1563 = vmatprep.subr.mxu0 0.0
    %1564 = vmatpush2.msra.mxu0 0.0
    %1565 = vmatprep.subr.mxu0 0.0
    %1566 = vmatpush2.msra.mxu0 0.0
    %1567 = vmatprep.subr.mxu0 0.0
    %1568 = vmatpush2.msra.mxu0 0.0
    %1569 = vmatprep.subr.mxu0 0.0
    %1570 = vmatpush2.msra.mxu0 0.0
    %1571 = vmatprep.subr.mxu0 0.0
    %1572 = vmatpush2.msra.mxu0 0.0
    %1573 = vmatprep.subr.mxu0 0.0
    %1574 = vmatpush2.msra.mxu0 0.0
    %1575 = vmatprep.subr.mxu0 0.0
    %1576 = vmatpush2.msra.mxu0 0.0
    %1577 = vmatprep.subr.mxu0 0.0
    %1578 = vmatpush2.msra.mxu0 0.0
    %1579 = vmatprep.subr.mxu0 0.0
    %1580 = vmatpush2.msra.mxu0 0.0
    %1581 = vmatprep.subr.mxu0 0.0
    %1582 = vmatpush2.msra.mxu0 0.0
    %1583 = vmatprep.subr.mxu0 0.0
    %1584 = vmatpush2.msra.mxu0 0.0
    %1585 = vmatprep.subr.mxu0 0.0
    %1586 = vmatpush2.msra.mxu0 0.0
    %1587 = vmatprep.subr.mxu0 0.0
    %1588 = vmatpush2.msra.mxu0 0.0
    %1589 = vmatprep.subr.mxu0 0.0
    %1590 = vmatpush2.msra.mxu0 0.0
    %1591 = vmatprep.subr.mxu0 0.0
    %1592 = vmatpush2.msra.mxu0 0.0
    %1593 = vmatprep.mubr.f32.mxu0 0.0
    %1594 = vmatmul.mubr.f32.gmra.mxu0 %v1524
    %v1595 = vpop.f32.mrf.mxu0
    %v1596 = vadd.f32 0.0, %v1595
    %v1597 = vpop.f32.mrf.mxu0
    %1598 = vmatprep.mubr.f32.mxu0 0.0
    %1599 = vmatmul.mubr.f32.gmra.mxu0 %v1527
    %v1600 = vpop.f32.mrf.mxu0
    %v1601 = vadd.f32 0.0, %v1600
    %v1602 = vpop.f32.mrf.mxu0
    %1603 = vdwg.mxu0
    %1604 = vrot.lane.b32.xlu0 %v1198, 112
    %v1605 = vpop.permute.xlu0 %1604
    %1606 = vrot.lane.b32.xlu0 %v1203, 112
    %v1607 = vpop.permute.xlu0 %1606
    %1608 = vrot.lane.b32.xlu0 %v1198, 80
    %v1609 = vpop.permute.xlu0 %1608
    %1610 = vrot.lane.b32.xlu0 %v1203, 80
    %v1611 = vpop.permute.xlu0 %1610
    %v1612 = vsel %vm56, %v1605, 0
    %v1614 = vsel %vm56, %v1607, 0
    %v1616 = vsel %vm56, %v1609, 0
    %v1618 = vsel %vm56, %v1611, 0
    %1620 = vmatprep.subr.mxu0 0.0
    %1621 = vmatpush1.xpose.msra.mxu0 0.0
    %1622 = vmatprep.subr.mxu0 0.0
    %1623 = vmatpush1.xpose.msra.mxu0 0.0
    %1624 = vmatprep.subr.mxu0 0.0
    %1625 = vmatpush1.xpose.msra.mxu0 0.0
    %1626 = vmatprep.subr.mxu0 0.0
    %1627 = vmatpush1.xpose.msra.mxu0 0.0
    %1628 = vmatprep.subr.mxu0 0.0
    %1629 = vmatpush1.xpose.msra.mxu0 0.0
    %1630 = vmatprep.subr.mxu0 0.0
    %1631 = vmatpush1.xpose.msra.mxu0 0.0
    %1632 = vmatprep.subr.mxu0 0.0
    %1633 = vmatpush1.xpose.msra.mxu0 0.0
    %1634 = vmatprep.subr.mxu0 0.0
    %1635 = vmatpush1.xpose.msra.mxu0 0.0
    %1636 = vmatprep.subr.mxu0 0.0
    %1637 = vmatpush1.xpose.msra.mxu0 0.0
    %1638 = vmatprep.subr.mxu0 0.0
    %1639 = vmatpush1.xpose.msra.mxu0 0.0
    %1640 = vmatprep.subr.mxu0 0.0
    %1641 = vmatpush1.xpose.msra.mxu0 0.0
    %1642 = vmatprep.subr.mxu0 0.0
    %1643 = vmatpush1.xpose.msra.mxu0 0.0
    %1644 = vmatprep.subr.mxu0 0.0
    %1645 = vmatpush1.xpose.msra.mxu0 0.0
    %1646 = vmatprep.subr.mxu0 0.0
    %1647 = vmatpush1.xpose.msra.mxu0 0.0
    %1648 = vmatprep.subr.mxu0 0.0
    %1649 = vmatpush1.xpose.msra.mxu0 %v1618
    %1650 = vmatprep.subr.mxu0 0.0
    %1651 = vmatpush1.xpose.msra.mxu0 %v1616
    %1652 = vmatprep.subr.mxu0 0.0
    %1653 = vmatpush2.xpose.msra.mxu0 0.0
    %1654 = vmatprep.subr.mxu0 0.0
    %1655 = vmatpush2.xpose.msra.mxu0 0.0
    %1656 = vmatprep.subr.mxu0 0.0
    %1657 = vmatpush2.xpose.msra.mxu0 0.0
    %1658 = vmatprep.subr.mxu0 0.0
    %1659 = vmatpush2.xpose.msra.mxu0 0.0
    %1660 = vmatprep.subr.mxu0 0.0
    %1661 = vmatpush2.xpose.msra.mxu0 0.0
    %1662 = vmatprep.subr.mxu0 0.0
    %1663 = vmatpush2.xpose.msra.mxu0 0.0
    %1664 = vmatprep.subr.mxu0 0.0
    %1665 = vmatpush2.xpose.msra.mxu0 0.0
    %1666 = vmatprep.subr.mxu0 0.0
    %1667 = vmatpush2.xpose.msra.mxu0 0.0
    %1668 = vmatprep.subr.mxu0 0.0
    %1669 = vmatpush2.xpose.msra.mxu0 0.0
    %1670 = vmatprep.subr.mxu0 0.0
    %1671 = vmatpush2.xpose.msra.mxu0 0.0
    %1672 = vmatprep.subr.mxu0 0.0
    %1673 = vmatpush2.xpose.msra.mxu0 0.0
    %1674 = vmatprep.subr.mxu0 0.0
    %1675 = vmatpush2.xpose.msra.mxu0 0.0
    %1676 = vmatprep.subr.mxu0 0.0
    %1677 = vmatpush2.xpose.msra.mxu0 0.0
    %1678 = vmatprep.subr.mxu0 0.0
    %1679 = vmatpush2.xpose.msra.mxu0 0.0
    %1680 = vmatprep.subr.mxu0 0.0
    %1681 = vmatpush2.xpose.msra.mxu0 0.0
    %1682 = vmatprep.subr.mxu0 0.0
    %1683 = vmatpush2.xpose.msra.mxu0 0.0
    %1684 = vmatprep.mubr.f32.mxu0 0.0
    %1685 = vmatmul.mubr.f32.gmra.mxu0 %v1612
    %v1686 = vpop.f32.mrf.mxu0
    %v1687 = vadd.f32 %v57, %v1686
    %v1688 = vpop.f32.mrf.mxu0
    %1689 = vmatprep.mubr.f32.mxu0 0.0
    %1690 = vmatmul.mubr.f32.gmra.mxu0 %v1614
    %v1691 = vpop.f32.mrf.mxu0
    %v1692 = vadd.f32 %v62, %v1691
    %v1693 = vpop.f32.mrf.mxu0
    %1694 = vdwg.mxu0
    %v1695 = vsel %vm238, %v1687, -inf
    %1696 = vmax.xlane.f32.xlu0 %v1695
    %v1697 = vpop.xlane.xlu0 %1696
    %v1698 = vsel %vm238, %v1692, -inf
    %1699 = vmax.xlane.f32.xlu0 %v1698
    %v1700 = vpop.xlane.xlu0 %1699
    %v1701 = vsub.f32 %v1687, %v1697
    %v1702 = vsub.f32 %v1692, %v1700
    %v1703 = vmul.f32 %v1701, 1.442695
    %v1704 = vpow.pop %v1703
    %v1705 = vmul.f32 %v1702, 1.442695
    %v1706 = vpow.pop %v1705
    %v1707 = vsel %vm238, %v1704, 0.0
    %1708 = vadd.xlane.f32.xlu0 %v1707
    %v1709 = vpop.xlane.xlu0 %1708
    %v1710 = vsel %vm238, %v1706, 0.0
    %1711 = vadd.xlane.f32.xlu0 %v1710
    %v1712 = vpop.xlane.xlu0 %1711
    %v1713 = vrcp.pop %v1709
    %v1714 = vrcp.pop %v1712
    %v1715 = vmul.f32 %v1704, %v1713
    %v1716 = vmul.f32 %v1706, %v1714
    %1717 = vrot.lane.b32.xlu0 %v1198, 48
    %v1718 = vpop.permute.xlu0 %1717
    %1719 = vrot.lane.b32.xlu0 %v1203, 48
    %v1720 = vpop.permute.xlu0 %1719
    %v1724 = vsel %vm238, %v1715, 0
    %v1727 = vsel %vm238, %v1716, 0
    %1729 = vmatprep.subr.mxu0 0.0
    %1730 = vmatpush1.msra.mxu0 0.0
    %1731 = vmatprep.subr.mxu0 0.0
    %1732 = vmatpush1.msra.mxu0 0.0
    %1733 = vmatprep.subr.mxu0 0.0
    %1734 = vmatpush1.msra.mxu0 0.0
    %1735 = vmatprep.subr.mxu0 0.0
    %1736 = vmatpush1.msra.mxu0 0.0
    %1737 = vmatprep.subr.mxu0 0.0
    %1738 = vmatpush1.msra.mxu0 0.0
    %1739 = vmatprep.subr.mxu0 0.0
    %1740 = vmatpush1.msra.mxu0 0.0
    %1741 = vmatprep.subr.mxu0 0.0
    %1742 = vmatpush1.msra.mxu0 0.0
    %1743 = vmatprep.subr.mxu0 0.0
    %1744 = vmatpush1.msra.mxu0 0.0
    %1745 = vmatprep.subr.mxu0 0.0
    %1746 = vmatpush1.msra.mxu0 0.0
    %1747 = vmatprep.subr.mxu0 0.0
    %1748 = vmatpush1.msra.mxu0 0.0
    %1749 = vmatprep.subr.mxu0 0.0
    %1750 = vmatpush1.msra.mxu0 0.0
    %1751 = vmatprep.subr.mxu0 0.0
    %1752 = vmatpush1.msra.mxu0 0.0
    %1753 = vmatprep.subr.mxu0 0.0
    %1754 = vmatpush1.msra.mxu0 0.0
    %1755 = vmatprep.subr.mxu0 0.0
    %1756 = vmatpush1.msra.mxu0 0.0
    %1757 = vmatprep.subr.mxu0 0.0
    %1758 = vmatpush1.msra.mxu0 %v1720
    %1759 = vmatprep.subr.mxu0 0.0
    %1760 = vmatpush1.msra.mxu0 %v1718
    %1761 = vmatprep.subr.mxu0 0.0
    %1762 = vmatpush2.msra.mxu0 0.0
    %1763 = vmatprep.subr.mxu0 0.0
    %1764 = vmatpush2.msra.mxu0 0.0
    %1765 = vmatprep.subr.mxu0 0.0
    %1766 = vmatpush2.msra.mxu0 0.0
    %1767 = vmatprep.subr.mxu0 0.0
    %1768 = vmatpush2.msra.mxu0 0.0
    %1769 = vmatprep.subr.mxu0 0.0
    %1770 = vmatpush2.msra.mxu0 0.0
    %1771 = vmatprep.subr.mxu0 0.0
    %1772 = vmatpush2.msra.mxu0 0.0
    %1773 = vmatprep.subr.mxu0 0.0
    %1774 = vmatpush2.msra.mxu0 0.0
    %1775 = vmatprep.subr.mxu0 0.0
    %1776 = vmatpush2.msra.mxu0 0.0
    %1777 = vmatprep.subr.mxu0 0.0
    %1778 = vmatpush2.msra.mxu0 0.0
    %1779 = vmatprep.subr.mxu0 0.0
    %1780 = vmatpush2.msra.mxu0 0.0
    %1781 = vmatprep.subr.mxu0 0.0
    %1782 = vmatpush2.msra.mxu0 0.0
    %1783 = vmatprep.subr.mxu0 0.0
    %1784 = vmatpush2.msra.mxu0 0.0
    %1785 = vmatprep.subr.mxu0 0.0
    %1786 = vmatpush2.msra.mxu0 0.0
    %1787 = vmatprep.subr.mxu0 0.0
    %1788 = vmatpush2.msra.mxu0 0.0
    %1789 = vmatprep.subr.mxu0 0.0
    %1790 = vmatpush2.msra.mxu0 0.0
    %1791 = vmatprep.subr.mxu0 0.0
    %1792 = vmatpush2.msra.mxu0 0.0
    %1793 = vmatprep.mubr.f32.mxu0 0.0
    %1794 = vmatmul.mubr.f32.gmra.mxu0 %v1724
    %v1795 = vpop.f32.mrf.mxu0
    %v1796 = vadd.f32 0.0, %v1795
    %v1797 = vpop.f32.mrf.mxu0
    %1798 = vmatprep.mubr.f32.mxu0 0.0
    %1799 = vmatmul.mubr.f32.gmra.mxu0 %v1727
    %v1800 = vpop.f32.mrf.mxu0
    %v1801 = vadd.f32 0.0, %v1800
    %v1802 = vpop.f32.mrf.mxu0
    %1803 = vdwg.mxu0
    %1804 = vrot.lane.b32.xlu0 %v1198, 104
    %v1805 = vpop.permute.xlu0 %1804
    %1806 = vrot.lane.b32.xlu0 %v1203, 104
    %v1807 = vpop.permute.xlu0 %1806
    %1808 = vrot.lane.b32.xlu0 %v1198, 72
    %v1809 = vpop.permute.xlu0 %1808
    %1810 = vrot.lane.b32.xlu0 %v1203, 72
    %v1811 = vpop.permute.xlu0 %1810
    %v1812 = vsel %vm56, %v1805, 0
    %v1814 = vsel %vm56, %v1807, 0
    %v1816 = vsel %vm56, %v1809, 0
    %v1818 = vsel %vm56, %v1811, 0
    %1820 = vmatprep.subr.mxu0 0.0
    %1821 = vmatpush1.xpose.msra.mxu0 0.0
    %1822 = vmatprep.subr.mxu0 0.0
    %1823 = vmatpush1.xpose.msra.mxu0 0.0
    %1824 = vmatprep.subr.mxu0 0.0
    %1825 = vmatpush1.xpose.msra.mxu0 0.0
    %1826 = vmatprep.subr.mxu0 0.0
    %1827 = vmatpush1.xpose.msra.mxu0 0.0
    %1828 = vmatprep.subr.mxu0 0.0
    %1829 = vmatpush1.xpose.msra.mxu0 0.0
    %1830 = vmatprep.subr.mxu0 0.0
    %1831 = vmatpush1.xpose.msra.mxu0 0.0
    %1832 = vmatprep.subr.mxu0 0.0
    %1833 = vmatpush1.xpose.msra.mxu0 0.0
    %1834 = vmatprep.subr.mxu0 0.0
    %1835 = vmatpush1.xpose.msra.mxu0 0.0
    %1836 = vmatprep.subr.mxu0 0.0
    %1837 = vmatpush1.xpose.msra.mxu0 0.0
    %1838 = vmatprep.subr.mxu0 0.0
    %1839 = vmatpush1.xpose.msra.mxu0 0.0
    %1840 = vmatprep.subr.mxu0 0.0
    %1841 = vmatpush1.xpose.msra.mxu0 0.0
    %1842 = vmatprep.subr.mxu0 0.0
    %1843 = vmatpush1.xpose.msra.mxu0 0.0
    %1844 = vmatprep.subr.mxu0 0.0
    %1845 = vmatpush1.xpose.msra.mxu0 0.0
    %1846 = vmatprep.subr.mxu0 0.0
    %1847 = vmatpush1.xpose.msra.mxu0 0.0
    %1848 = vmatprep.subr.mxu0 0.0
    %1849 = vmatpush1.xpose.msra.mxu0 %v1818
    %1850 = vmatprep.subr.mxu0 0.0
    %1851 = vmatpush1.xpose.msra.mxu0 %v1816
    %1852 = vmatprep.subr.mxu0 0.0
    %1853 = vmatpush2.xpose.msra.mxu0 0.0
    %1854 = vmatprep.subr.mxu0 0.0
    %1855 = vmatpush2.xpose.msra.mxu0 0.0
    %1856 = vmatprep.subr.mxu0 0.0
    %1857 = vmatpush2.xpose.msra.mxu0 0.0
    %1858 = vmatprep.subr.mxu0 0.0
    %1859 = vmatpush2.xpose.msra.mxu0 0.0
    %1860 = vmatprep.subr.mxu0 0.0
    %1861 = vmatpush2.xpose.msra.mxu0 0.0
    %1862 = vmatprep.subr.mxu0 0.0
    %1863 = vmatpush2.xpose.msra.mxu0 0.0
    %1864 = vmatprep.subr.mxu0 0.0
    %1865 = vmatpush2.xpose.msra.mxu0 0.0
    %1866 = vmatprep.subr.mxu0 0.0
    %1867 = vmatpush2.xpose.msra.mxu0 0.0
    %1868 = vmatprep.subr.mxu0 0.0
    %1869 = vmatpush2.xpose.msra.mxu0 0.0
    %1870 = vmatprep.subr.mxu0 0.0
    %1871 = vmatpush2.xpose.msra.mxu0 0.0
    %1872 = vmatprep.subr.mxu0 0.0
    %1873 = vmatpush2.xpose.msra.mxu0 0.0
    %1874 = vmatprep.subr.mxu0 0.0
    %1875 = vmatpush2.xpose.msra.mxu0 0.0
    %1876 = vmatprep.subr.mxu0 0.0
    %1877 = vmatpush2.xpose.msra.mxu0 0.0
    %1878 = vmatprep.subr.mxu0 0.0
    %1879 = vmatpush2.xpose.msra.mxu0 0.0
    %1880 = vmatprep.subr.mxu0 0.0
    %1881 = vmatpush2.xpose.msra.mxu0 0.0
    %1882 = vmatprep.subr.mxu0 0.0
    %1883 = vmatpush2.xpose.msra.mxu0 0.0
    %1884 = vmatprep.mubr.f32.mxu0 0.0
    %1885 = vmatmul.mubr.f32.gmra.mxu0 %v1812
    %v1886 = vpop.f32.mrf.mxu0
    %v1887 = vadd.f32 %v57, %v1886
    %v1888 = vpop.f32.mrf.mxu0
    %1889 = vmatprep.mubr.f32.mxu0 0.0
    %1890 = vmatmul.mubr.f32.gmra.mxu0 %v1814
    %v1891 = vpop.f32.mrf.mxu0
    %v1892 = vadd.f32 %v62, %v1891
    %v1893 = vpop.f32.mrf.mxu0
    %1894 = vdwg.mxu0
    %v1895 = vsel %vm238, %v1887, -inf
    %1896 = vmax.xlane.f32.xlu0 %v1895
    %v1897 = vpop.xlane.xlu0 %1896
    %v1898 = vsel %vm238, %v1892, -inf
    %1899 = vmax.xlane.f32.xlu0 %v1898
    %v1900 = vpop.xlane.xlu0 %1899
    %v1901 = vsub.f32 %v1887, %v1897
    %v1902 = vsub.f32 %v1892, %v1900
    %v1903 = vmul.f32 %v1901, 1.442695
    %v1904 = vpow.pop %v1903
    %v1905 = vmul.f32 %v1902, 1.442695
    %v1906 = vpow.pop %v1905
    %v1907 = vsel %vm238, %v1904, 0.0
    %1908 = vadd.xlane.f32.xlu0 %v1907
    %v1909 = vpop.xlane.xlu0 %1908
    %v1910 = vsel %vm238, %v1906, 0.0
    %1911 = vadd.xlane.f32.xlu0 %v1910
    %v1912 = vpop.xlane.xlu0 %1911
    %v1913 = vrcp.pop %v1909
    %v1914 = vrcp.pop %v1912
    %v1915 = vmul.f32 %v1904, %v1913
    %v1916 = vmul.f32 %v1906, %v1914
    %1917 = vrot.lane.b32.xlu0 %v1198, 40
    %v1918 = vpop.permute.xlu0 %1917
    %1919 = vrot.lane.b32.xlu0 %v1203, 40
    %v1920 = vpop.permute.xlu0 %1919
    %v1924 = vsel %vm238, %v1915, 0
    %v1927 = vsel %vm238, %v1916, 0
    %1929 = vmatprep.subr.mxu0 0.0
    %1930 = vmatpush1.msra.mxu0 0.0
    %1931 = vmatprep.subr.mxu0 0.0
    %1932 = vmatpush1.msra.mxu0 0.0
    %1933 = vmatprep.subr.mxu0 0.0
    %1934 = vmatpush1.msra.mxu0 0.0
    %1935 = vmatprep.subr.mxu0 0.0
    %1936 = vmatpush1.msra.mxu0 0.0
    %1937 = vmatprep.subr.mxu0 0.0
    %1938 = vmatpush1.msra.mxu0 0.0
    %1939 = vmatprep.subr.mxu0 0.0
    %1940 = vmatpush1.msra.mxu0 0.0
    %1941 = vmatprep.subr.mxu0 0.0
    %1942 = vmatpush1.msra.mxu0 0.0
    %1943 = vmatprep.subr.mxu0 0.0
    %1944 = vmatpush1.msra.mxu0 0.0
    %1945 = vmatprep.subr.mxu0 0.0
    %1946 = vmatpush1.msra.mxu0 0.0
    %1947 = vmatprep.subr.mxu0 0.0
    %1948 = vmatpush1.msra.mxu0 0.0
    %1949 = vmatprep.subr.mxu0 0.0
    %1950 = vmatpush1.msra.mxu0 0.0
    %1951 = vmatprep.subr.mxu0 0.0
    %1952 = vmatpush1.msra.mxu0 0.0
    %1953 = vmatprep.subr.mxu0 0.0
    %1954 = vmatpush1.msra.mxu0 0.0
    %1955 = vmatprep.subr.mxu0 0.0
    %1956 = vmatpush1.msra.mxu0 0.0
    %1957 = vmatprep.subr.mxu0 0.0
    %1958 = vmatpush1.msra.mxu0 %v1920
    %1959 = vmatprep.subr.mxu0 0.0
    %1960 = vmatpush1.msra.mxu0 %v1918
    %1961 = vmatprep.subr.mxu0 0.0
    %1962 = vmatpush2.msra.mxu0 0.0
    %1963 = vmatprep.subr.mxu0 0.0
    %1964 = vmatpush2.msra.mxu0 0.0
    %1965 = vmatprep.subr.mxu0 0.0
    %1966 = vmatpush2.msra.mxu0 0.0
    %1967 = vmatprep.subr.mxu0 0.0
    %1968 = vmatpush2.msra.mxu0 0.0
    %1969 = vmatprep.subr.mxu0 0.0
    %1970 = vmatpush2.msra.mxu0 0.0
    %1971 = vmatprep.subr.mxu0 0.0
    %1972 = vmatpush2.msra.mxu0 0.0
    %1973 = vmatprep.subr.mxu0 0.0
    %1974 = vmatpush2.msra.mxu0 0.0
    %1975 = vmatprep.subr.mxu0 0.0
    %1976 = vmatpush2.msra.mxu0 0.0
    %1977 = vmatprep.subr.mxu0 0.0
    %1978 = vmatpush2.msra.mxu0 0.0
    %1979 = vmatprep.subr.mxu0 0.0
    %1980 = vmatpush2.msra.mxu0 0.0
    %1981 = vmatprep.subr.mxu0 0.0
    %1982 = vmatpush2.msra.mxu0 0.0
    %1983 = vmatprep.subr.mxu0 0.0
    %1984 = vmatpush2.msra.mxu0 0.0
    %1985 = vmatprep.subr.mxu0 0.0
    %1986 = vmatpush2.msra.mxu0 0.0
    %1987 = vmatprep.subr.mxu0 0.0
    %1988 = vmatpush2.msra.mxu0 0.0
    %1989 = vmatprep.subr.mxu0 0.0
    %1990 = vmatpush2.msra.mxu0 0.0
    %1991 = vmatprep.subr.mxu0 0.0
    %1992 = vmatpush2.msra.mxu0 0.0
    %1993 = vmatprep.mubr.f32.mxu0 0.0
    %1994 = vmatmul.mubr.f32.gmra.mxu0 %v1924
    %v1995 = vpop.f32.mrf.mxu0
    %v1996 = vadd.f32 0.0, %v1995
    %v1997 = vpop.f32.mrf.mxu0
    %1998 = vmatprep.mubr.f32.mxu0 0.0
    %1999 = vmatmul.mubr.f32.gmra.mxu0 %v1927
    %v2000 = vpop.f32.mrf.mxu0
    %v2001 = vadd.f32 0.0, %v2000
    %v2002 = vpop.f32.mrf.mxu0
    %2003 = vdwg.mxu0
    %2006 = vrot.lane.b32.xlu0 %v1596, 8
    %v2007 = vpop.permute.xlu0 %2006
    %2008 = vrot.lane.b32.xlu0 %v1601, 8
    %v2009 = vpop.permute.xlu0 %2008
    %2014 = vrot.lane.b32.xlu0 %v1796, 16
    %v2015 = vpop.permute.xlu0 %2014
    %2016 = vrot.lane.b32.xlu0 %v1801, 16
    %v2017 = vpop.permute.xlu0 %2016
    %2022 = vrot.lane.b32.xlu0 %v1996, 24
    %v2023 = vpop.permute.xlu0 %2022
    %2024 = vrot.lane.b32.xlu0 %v2001, 24
    %v2025 = vpop.permute.xlu0 %2024
    %v2028 = vsel %vm56, %v1396, %v2007
    %v2029 = vsel %vm56, %v1401, %v2009
    %v2030 = vsel %vm238, %v2028, %v2015
    %v2031 = vsel %vm238, %v2029, %v2017
    %v2032 = vsel %vm976, %v2030, %v2023
    %v2033 = vsel %vm976, %v2031, %v2025
    %v2034 = vlaneseq
    %v2035 = vshrl.u32 %v2034, 7
    %v2036 = vsub.s32 3, %v2035
    %v2037 = vrot.slane %v51, %v2036
    %2042 = vrot.lane.b32.xlu0 %v24, 32
    %v2043 = vpop.permute.xlu0 %2042
    %2044 = vrot.lane.b32.xlu0 %v27, 32
    %v2045 = vpop.permute.xlu0 %2044
    %2046 = vrot.lane.b32.xlu0 %v30, 32
    %v2047 = vpop.permute.xlu0 %2046
    %2048 = vrot.lane.b32.xlu0 %v33, 32
    %v2049 = vpop.permute.xlu0 %2048
    %v2055 = vsel %vm67, %v2032, 0
    %v2058 = vsel %vm67, %v2033, 0
    %2060 = vmatprep.subr.mxu0 0.0
    %2061 = vmatpush1.msra.mxu0 0.0
    %2062 = vmatprep.subr.mxu0 0.0
    %2063 = vmatpush1.msra.mxu0 0.0
    %2064 = vmatprep.subr.mxu0 0.0
    %2065 = vmatpush1.msra.mxu0 0.0
    %2066 = vmatprep.subr.mxu0 0.0
    %2067 = vmatpush1.msra.mxu0 0.0
    %2068 = vmatprep.subr.mxu0 0.0
    %2069 = vmatpush1.msra.mxu0 0.0
    %2070 = vmatprep.subr.mxu0 0.0
    %2071 = vmatpush1.msra.mxu0 0.0
    %2072 = vmatprep.subr.mxu0 0.0
    %2073 = vmatpush1.msra.mxu0 0.0
    %2074 = vmatprep.subr.mxu0 0.0
    %2075 = vmatpush1.msra.mxu0 0.0
    %2076 = vmatprep.subr.mxu0 0.0
    %2077 = vmatpush1.msra.mxu0 0.0
    %2078 = vmatprep.subr.mxu0 0.0
    %2079 = vmatpush1.msra.mxu0 0.0
    %2080 = vmatprep.subr.mxu0 0.0
    %2081 = vmatpush1.msra.mxu0 0.0
    %2082 = vmatprep.subr.mxu0 0.0
    %2083 = vmatpush1.msra.mxu0 0.0
    %2084 = vmatprep.subr.mxu0 0.0
    %2085 = vmatpush1.msra.mxu0 %v2049
    %2086 = vmatprep.subr.mxu0 0.0
    %2087 = vmatpush1.msra.mxu0 %v2047
    %2088 = vmatprep.subr.mxu0 0.0
    %2089 = vmatpush1.msra.mxu0 %v2045
    %2090 = vmatprep.subr.mxu0 0.0
    %2091 = vmatpush1.msra.mxu0 %v2043
    %2092 = vmatprep.subr.mxu0 0.0
    %2093 = vmatpush2.msra.mxu0 0.0
    %2094 = vmatprep.subr.mxu0 0.0
    %2095 = vmatpush2.msra.mxu0 0.0
    %2096 = vmatprep.subr.mxu0 0.0
    %2097 = vmatpush2.msra.mxu0 0.0
    %2098 = vmatprep.subr.mxu0 0.0
    %2099 = vmatpush2.msra.mxu0 0.0
    %2100 = vmatprep.subr.mxu0 0.0
    %2101 = vmatpush2.msra.mxu0 0.0
    %2102 = vmatprep.subr.mxu0 0.0
    %2103 = vmatpush2.msra.mxu0 0.0
    %2104 = vmatprep.subr.mxu0 0.0
    %2105 = vmatpush2.msra.mxu0 0.0
    %2106 = vmatprep.subr.mxu0 0.0
    %2107 = vmatpush2.msra.mxu0 0.0
    %2108 = vmatprep.subr.mxu0 0.0
    %2109 = vmatpush2.msra.mxu0 0.0
    %2110 = vmatprep.subr.mxu0 0.0
    %2111 = vmatpush2.msra.mxu0 0.0
    %2112 = vmatprep.subr.mxu0 0.0
    %2113 = vmatpush2.msra.mxu0 0.0
    %2114 = vmatprep.subr.mxu0 0.0
    %2115 = vmatpush2.msra.mxu0 0.0
    %2116 = vmatprep.subr.mxu0 0.0
    %2117 = vmatpush2.msra.mxu0 0.0
    %2118 = vmatprep.subr.mxu0 0.0
    %2119 = vmatpush2.msra.mxu0 0.0
    %2120 = vmatprep.subr.mxu0 0.0
    %2121 = vmatpush2.msra.mxu0 0.0
    %2122 = vmatprep.subr.mxu0 0.0
    %2123 = vmatpush2.msra.mxu0 0.0
    %2124 = vmatprep.mubr.f32.mxu0 0.0
    %2125 = vmatmul.mubr.f32.gmra.mxu0 %v2055
    %v2126 = vpop.f32.mrf.mxu0
    %v2127 = vadd.f32 %v2037, %v2126
    %v2128 = vpop.f32.mrf.mxu0
    %2129 = vmatprep.mubr.f32.mxu0 0.0
    %2130 = vmatmul.mubr.f32.gmra.mxu0 %v2058
    %v2131 = vpop.f32.mrf.mxu0
    %v2132 = vadd.f32 %v2037, %v2131
    %v2133 = vpop.f32.mrf.mxu0
    %2134 = vdwg.mxu0
    %v2135 = vadd.f32 %v2127, %v1119
    %v2136 = vadd.f32 %v2132, %v1120
    %v2137 = vsel %vm67, %v2135, 0.0
    %2138 = vadd.xlane.f32.xlu0 %v2137
    %v2139 = vpop.xlane.xlu0 %2138
    %v2140 = vsel %vm67, %v2136, 0.0
    %2141 = vadd.xlane.f32.xlu0 %v2140
    %v2142 = vpop.xlane.xlu0 %2141
    %v2143 = vmul.f32 %v2139, %v1088
    %v2144 = vmul.f32 %v2142, %v1088
    %v2145 = vsub.f32 %v2135, %v2143
    %v2146 = vsub.f32 %v2136, %v2144
    %v2147 = vmul.f32 %v2145, %v2145
    %v2148 = vmul.f32 %v2146, %v2146
    %v2149 = vsel %vm67, %v2147, 0.0
    %2150 = vadd.xlane.f32.xlu0 %v2149
    %v2151 = vpop.xlane.xlu0 %2150
    %v2152 = vsel %vm67, %v2148, 0.0
    %2153 = vadd.xlane.f32.xlu0 %v2152
    %v2154 = vpop.xlane.xlu0 %2153
    %v2155 = vmul.f32 %v2151, %v1088
    %v2156 = vmul.f32 %v2154, %v1088
    %v2157 = vadd.f32 %v2155, 1e-05
    %v2158 = vadd.f32 %v2156, 1e-05
    %v2159 = vrsqrt.pop %v2157
    %v2160 = vrsqrt.pop %v2158
    %v2161 = vmul.f32 %v2145, %v2159
    %v2162 = vmul.f32 %v2146, %v2160
    %v2163 = vlaneseq
    %v2164 = vshrl.u32 %v2163, 7
    %v2165 = vsub.s32 7, %v2164
    %v2166 = vrot.slane %v51, %v2165
    %v2167 = vmul.f32 %v2161, %v2166
    %v2168 = vmul.f32 %v2162, %v2166
    %v2169 = vlaneseq
    %v2170 = vshrl.u32 %v2169, 7
    %v2171 = vsub.s32 2, %v2170
    %v2172 = vrot.slane %v52, %v2171
    %v2173 = vadd.f32 %v2167, %v2172
    %v2174 = vadd.f32 %v2168, %v2172
    %v2175 = vlaneseq
    %v2176 = vshrl.u32 %v2175, 7
    %v2177 = vsub.s32 4, %v2176
    %v2178 = vrot.slane %v51, %v2177
    %v2180 = vsel %vm67, %v2173, 0
    %v2183 = vsel %vm67, %v2174, 0
    %2185 = vmatprep.subr.mxu0 0.0
    %2186 = vmatpush1.msra.mxu0 0.0
    %2187 = vmatprep.subr.mxu0 0.0
    %2188 = vmatpush1.msra.mxu0 0.0
    %2189 = vmatprep.subr.mxu0 0.0
    %2190 = vmatpush1.msra.mxu0 0.0
    %2191 = vmatprep.subr.mxu0 0.0
    %2192 = vmatpush1.msra.mxu0 0.0
    %2193 = vmatprep.subr.mxu0 0.0
    %2194 = vmatpush1.msra.mxu0 0.0
    %2195 = vmatprep.subr.mxu0 0.0
    %2196 = vmatpush1.msra.mxu0 0.0
    %2197 = vmatprep.subr.mxu0 0.0
    %2198 = vmatpush1.msra.mxu0 0.0
    %2199 = vmatprep.subr.mxu0 0.0
    %2200 = vmatpush1.msra.mxu0 0.0
    %2201 = vmatprep.subr.mxu0 0.0
    %2202 = vmatpush1.msra.mxu0 0.0
    %2203 = vmatprep.subr.mxu0 0.0
    %2204 = vmatpush1.msra.mxu0 0.0
    %2205 = vmatprep.subr.mxu0 0.0
    %2206 = vmatpush1.msra.mxu0 0.0
    %2207 = vmatprep.subr.mxu0 0.0
    %2208 = vmatpush1.msra.mxu0 0.0
    %2209 = vmatprep.subr.mxu0 0.0
    %2210 = vmatpush1.msra.mxu0 %v34
    %2211 = vmatprep.subr.mxu0 0.0
    %2212 = vmatpush1.msra.mxu0 %v31
    %2213 = vmatprep.subr.mxu0 0.0
    %2214 = vmatpush1.msra.mxu0 %v28
    %2215 = vmatprep.subr.mxu0 0.0
    %2216 = vmatpush1.msra.mxu0 %v25
    %2217 = vmatprep.subr.mxu0 0.0
    %2218 = vmatpush2.msra.mxu0 0.0
    %2219 = vmatprep.subr.mxu0 0.0
    %2220 = vmatpush2.msra.mxu0 0.0
    %2221 = vmatprep.subr.mxu0 0.0
    %2222 = vmatpush2.msra.mxu0 0.0
    %2223 = vmatprep.subr.mxu0 0.0
    %2224 = vmatpush2.msra.mxu0 0.0
    %2225 = vmatprep.subr.mxu0 0.0
    %2226 = vmatpush2.msra.mxu0 0.0
    %2227 = vmatprep.subr.mxu0 0.0
    %2228 = vmatpush2.msra.mxu0 0.0
    %2229 = vmatprep.subr.mxu0 0.0
    %2230 = vmatpush2.msra.mxu0 0.0
    %2231 = vmatprep.subr.mxu0 0.0
    %2232 = vmatpush2.msra.mxu0 0.0
    %2233 = vmatprep.subr.mxu0 0.0
    %2234 = vmatpush2.msra.mxu0 0.0
    %2235 = vmatprep.subr.mxu0 0.0
    %2236 = vmatpush2.msra.mxu0 0.0
    %2237 = vmatprep.subr.mxu0 0.0
    %2238 = vmatpush2.msra.mxu0 0.0
    %2239 = vmatprep.subr.mxu0 0.0
    %2240 = vmatpush2.msra.mxu0 0.0
    %2241 = vmatprep.subr.mxu0 0.0
    %2242 = vmatpush2.msra.mxu0 0.0
    %2243 = vmatprep.subr.mxu0 0.0
    %2244 = vmatpush2.msra.mxu0 0.0
    %2245 = vmatprep.subr.mxu0 0.0
    %2246 = vmatpush2.msra.mxu0 0.0
    %2247 = vmatprep.subr.mxu0 0.0
    %2248 = vmatpush2.msra.mxu0 0.0
    %2249 = vmatprep.mubr.f32.mxu0 0.0
    %2250 = vmatmul.mubr.f32.gmra.mxu0 %v2180
    %v2251 = vpop.f32.mrf.mxu0
    %v2252 = vadd.f32 %v2178, %v2251
    %v2253 = vpop.f32.mrf.mxu0
    %2254 = vmatprep.mubr.f32.mxu0 0.0
    %2255 = vmatmul.mubr.f32.gmra.mxu0 %v2183
    %v2256 = vpop.f32.mrf.mxu0
    %v2257 = vadd.f32 %v2178, %v2256
    %v2258 = vpop.f32.mrf.mxu0
    %2259 = vdwg.mxu0
    %v2260 = vmax.f32 %v2252, 0.0
    %v2261 = vmax.f32 %v2257, 0.0
    %v2262 = vlaneseq
    %v2263 = vshrl.u32 %v2262, 7
    %v2264 = vsub.s32 5, %v2263
    %v2265 = vrot.slane %v51, %v2264
    %2266 = vmatprep.subr.mxu0 0.0
    %2267 = vmatpush1.msra.mxu0 %v50
    %2268 = vmatprep.subr.mxu0 0.0
    %2269 = vmatpush1.msra.mxu0 %v49
    %2270 = vmatprep.subr.mxu0 0.0
    %2271 = vmatpush1.msra.mxu0 %v48
    %2272 = vmatprep.subr.mxu0 0.0
    %2273 = vmatpush1.msra.mxu0 %v47
    %2274 = vmatprep.subr.mxu0 0.0
    %2275 = vmatpush1.msra.mxu0 %v46
    %2276 = vmatprep.subr.mxu0 0.0
    %2277 = vmatpush1.msra.mxu0 %v45
    %2278 = vmatprep.subr.mxu0 0.0
    %2279 = vmatpush1.msra.mxu0 %v44
    %2280 = vmatprep.subr.mxu0 0.0
    %2281 = vmatpush1.msra.mxu0 %v43
    %2282 = vmatprep.subr.mxu0 0.0
    %2283 = vmatpush1.msra.mxu0 %v42
    %2284 = vmatprep.subr.mxu0 0.0
    %2285 = vmatpush1.msra.mxu0 %v41
    %2286 = vmatprep.subr.mxu0 0.0
    %2287 = vmatpush1.msra.mxu0 %v40
    %2288 = vmatprep.subr.mxu0 0.0
    %2289 = vmatpush1.msra.mxu0 %v39
    %2290 = vmatprep.subr.mxu0 0.0
    %2291 = vmatpush1.msra.mxu0 %v38
    %2292 = vmatprep.subr.mxu0 0.0
    %2293 = vmatpush1.msra.mxu0 %v37
    %2294 = vmatprep.subr.mxu0 0.0
    %2295 = vmatpush1.msra.mxu0 %v36
    %2296 = vmatprep.subr.mxu0 0.0
    %2297 = vmatpush1.msra.mxu0 %v35
    %2298 = vmatprep.subr.mxu0 0.0
    %2299 = vmatpush2.msra.mxu0 0.0
    %2300 = vmatprep.subr.mxu0 0.0
    %2301 = vmatpush2.msra.mxu0 0.0
    %2302 = vmatprep.subr.mxu0 0.0
    %2303 = vmatpush2.msra.mxu0 0.0
    %2304 = vmatprep.subr.mxu0 0.0
    %2305 = vmatpush2.msra.mxu0 0.0
    %2306 = vmatprep.subr.mxu0 0.0
    %2307 = vmatpush2.msra.mxu0 0.0
    %2308 = vmatprep.subr.mxu0 0.0
    %2309 = vmatpush2.msra.mxu0 0.0
    %2310 = vmatprep.subr.mxu0 0.0
    %2311 = vmatpush2.msra.mxu0 0.0
    %2312 = vmatprep.subr.mxu0 0.0
    %2313 = vmatpush2.msra.mxu0 0.0
    %2314 = vmatprep.subr.mxu0 0.0
    %2315 = vmatpush2.msra.mxu0 0.0
    %2316 = vmatprep.subr.mxu0 0.0
    %2317 = vmatpush2.msra.mxu0 0.0
    %2318 = vmatprep.subr.mxu0 0.0
    %2319 = vmatpush2.msra.mxu0 0.0
    %2320 = vmatprep.subr.mxu0 0.0
    %2321 = vmatpush2.msra.mxu0 0.0
    %2322 = vmatprep.subr.mxu0 0.0
    %2323 = vmatpush2.msra.mxu0 0.0
    %2324 = vmatprep.subr.mxu0 0.0
    %2325 = vmatpush2.msra.mxu0 0.0
    %2326 = vmatprep.subr.mxu0 0.0
    %2327 = vmatpush2.msra.mxu0 0.0
    %2328 = vmatprep.subr.mxu0 0.0
    %2329 = vmatpush2.msra.mxu0 0.0
    %2330 = vmatprep.mubr.f32.mxu0 0.0
    %2331 = vmatmul.mubr.f32.gmra.mxu0 %v2260
    %v2332 = vpop.f32.mrf.mxu0
    %v2333 = vadd.f32 %v2265, %v2332
    %v2334 = vpop.f32.mrf.mxu0
    %2335 = vmatprep.mubr.f32.mxu0 0.0
    %2336 = vmatmul.mubr.f32.gmra.mxu0 %v2261
    %v2337 = vpop.f32.mrf.mxu0
    %v2338 = vadd.f32 %v2265, %v2337
    %v2339 = vpop.f32.mrf.mxu0
    %2340 = vdwg.mxu0
    %v2341 = vadd.f32 %v2333, %v2173
    %v2342 = vadd.f32 %v2338, %v2174
    %v2343 = vsel %vm67, %v2341, 0.0
    %2344 = vadd.xlane.f32.xlu0 %v2343
    %v2345 = vpop.xlane.xlu0 %2344
    %v2346 = vsel %vm67, %v2342, 0.0
    %2347 = vadd.xlane.f32.xlu0 %v2346
    %v2348 = vpop.xlane.xlu0 %2347
    %v2349 = vmul.f32 %v2345, %v1088
    %v2350 = vmul.f32 %v2348, %v1088
    %v2351 = vsub.f32 %v2341, %v2349
    %v2352 = vsub.f32 %v2342, %v2350
    %v2353 = vmul.f32 %v2351, %v2351
    %v2354 = vmul.f32 %v2352, %v2352
    %v2355 = vsel %vm67, %v2353, 0.0
    %2356 = vadd.xlane.f32.xlu0 %v2355
    %v2357 = vpop.xlane.xlu0 %2356
    %v2358 = vsel %vm67, %v2354, 0.0
    %2359 = vadd.xlane.f32.xlu0 %v2358
    %v2360 = vpop.xlane.xlu0 %2359
    %v2361 = vmul.f32 %v2357, %v1088
    %v2362 = vmul.f32 %v2360, %v1088
    %v2363 = vadd.f32 %v2361, 1e-05
    %v2364 = vadd.f32 %v2362, 1e-05
    %v2365 = vrsqrt.pop %v2363
    %v2366 = vrsqrt.pop %v2364
    %v2367 = vmul.f32 %v2351, %v2365
    %v2368 = vmul.f32 %v2352, %v2366
    %v2369 = vlaneseq
    %v2370 = vshrl.u32 %v2369, 7
    %v2371 = vsub.s32 0, %v2370
    %v2372 = vrot.slane %v52, %v2371
    %v2373 = vmul.f32 %v2367, %v2372
    %v2374 = vmul.f32 %v2368, %v2372
    %v2375 = vlaneseq
    %v2376 = vshrl.u32 %v2375, 7
    %v2377 = vsub.s32 3, %v2376
    %v2378 = vrot.slane %v52, %v2377
    %v2379 = vadd.f32 %v2373, %v2378
    %v2380 = vadd.f32 %v2374, %v2378
    %2381 = vst.msk [vmem:[#allocation2] sm:$0xff] %vm67, %v2379
    %2382 = vst.msk [vmem:[#allocation2 + $0x8] sm:$0xff] %vm67, %v2380
    // Predicated region
    $region22: #{decoder_block.1} parent=1 // pred_check
      _
    $region23: #{decoder_block.1} parent=1 // pred_check_branch
      %2384 = sbr.rel (0) target = $region25
    $region24: #{decoder_block.1} parent=1 // pred_region
      %s2386 = ssub.s32 256, 256
      %2387 = vsyncadd [#allocation3], %s2386
      %s2388 = sshll.u32 [#allocation2], 4
      %s2389 = int_to_ptr.vmem [resolvable:$true] %s2388
      %2394 = dma.vmem_to_hbm [thread:$0]  %s2389, 256, %s5, [#allocation3], 128, 128, 8
    $region25: #{decoder_block.1} parent=1 // pred_fallthru
      _
    // Predicated region
    $region26: #{decoder_block.1} parent=1 // pred_check
      _
    $region27: #{decoder_block.1} parent=1 // pred_check_branch
      %2396 = sbr.rel (0) target = $region29
    $region28: #{decoder_block.1} parent=1 // pred_region
      %2397 = dma.done [#allocation3], 256
    $region29: #{decoder_block.1} parent=1 // pred_fallthru
      _
    %2398 = vsyncpa [#allocation3], 1

</llo_original>
